<compile_context>
chip_gen: v5e
topology: v5e:2x2
jax: 0.10.0
libtpu: 0.0.40
codegen_flags: <defaults>
</compile_context>

<pallas_src>
import jax
import jax.numpy as jnp
from jax.experimental import pallas as pl
from jax.experimental.pallas import tpu as pltpu

IMG_SHAPE = (1, 28, 28)
IN_DIM = 1 * 28 * 28   # 784
H1 = 512
H2 = 256
OUT_DIM = 1
TB_MAX = 1024          # max batch tile (multiple of 8); ~17 MiB VMEM footprint


def _round_up(x, m):
    return (x + m - 1) // m * m


def _discriminator_kernel(x_ref, w1_ref, b1_ref, w2_ref, b2_ref,
                          w3_ref, b3_ref, out_ref):
    # Activation tile arrives f32 straight from HBM; cast to bf16 in-register.
    x = x_ref[...].astype(jnp.bfloat16)                               # (TB, 784)

    # Linear(784->512) + LeakyReLU(0.2): bf16 MXU, f32 accumulate.
    h1 = jnp.dot(x, w1_ref[...], preferred_element_type=jnp.float32)  # (TB, 512)
    h1 = h1 + b1_ref[...]                                             # (1, 512) f32
    h1 = jnp.maximum(h1, 0.2 * h1)

    # Linear(512->256) + LeakyReLU(0.2): bf16 MXU, f32 accumulate.
    h2 = jnp.dot(h1.astype(jnp.bfloat16), w2_ref[...],
                 preferred_element_type=jnp.float32)                  # (TB, 256)
    h2 = h2 + b2_ref[...]
    h2 = jnp.maximum(h2, 0.2 * h2)

    # Linear(256->1): VPU multiply + lane reduce instead of an N=1 MXU pass.
    h3 = jnp.sum(h2 * w3_ref[...], axis=-1, keepdims=True)            # (TB, 1)
    h3 = h3 + b3_ref[...]

    # Numerically stable sigmoid; epilogue is (TB,1) so exact reciprocal is free.
    e = jnp.exp(-jnp.abs(h3))
    inv = pl.reciprocal(1.0 + e)
    out_ref[...] = jnp.where(h3 >= 0, inv, e * inv)


def prepare_params(params):
    """One-time conversion to kernel-ready layout (cast / reshape, done once)."""
    w1, b1, w2, b2, w3, b3 = params
    return (w1.astype(jnp.bfloat16),                                  # (784, 512)
            b1.reshape(1, H1).astype(jnp.float32),
            w2.astype(jnp.bfloat16),                                  # (512, 256)
            b2.reshape(1, H2).astype(jnp.float32),
            w3.reshape(1, H2).astype(jnp.float32),                    # row vector
            b3.reshape(1, 1).astype(jnp.float32))


@jax.jit
def discriminator_forward(img, prepared_params):
    """img: (B, 1, 28, 28) float32 (NCHW). Returns validity: (B, 1) float32."""
    b = img.shape[0]
    w1, b1, w2, b2, w3, b3 = prepared_params

    tb = min(TB_MAX, _round_up(b, 8))          # batch tile (multiple of 8)
    grid = (pl.cdiv(b, tb),)                   # partial last tile allowed

    x = img.reshape(b, IN_DIM)                 # free view; stays f32

    flops = 2 * b * (IN_DIM * H1 + H1 * H2 + H2)
    bytes_accessed = (b * IN_DIM * 4                       # x (f32)
                      + (IN_DIM * H1 + H1 * H2) * 2        # w1, w2 (bf16)
                      + (H1 + H2 + H2 + 1) * 4             # biases + w3 row (f32)
                      + b * OUT_DIM * 4)                   # out (f32)

    return pl.pallas_call(
        _discriminator_kernel,
        out_shape=jax.ShapeDtypeStruct((b, OUT_DIM), jnp.float32),
        grid=grid,
        in_specs=[
            pl.BlockSpec((tb, IN_DIM), lambda i: (i, 0)),   # x: tiled over batch
            pl.BlockSpec((IN_DIM, H1), lambda i: (0, 0)),   # w1: resident
            pl.BlockSpec((1, H1),      lambda i: (0, 0)),   # b1: resident
            pl.BlockSpec((H1, H2),     lambda i: (0, 0)),   # w2: resident
            pl.BlockSpec((1, H2),      lambda i: (0, 0)),   # b2: resident
            pl.BlockSpec((1, H2),      lambda i: (0, 0)),   # w3 row: resident
            pl.BlockSpec((1, 1),       lambda i: (0, 0)),   # b3: resident
        ],
        out_specs=pl.BlockSpec((tb, OUT_DIM), lambda i: (i, 0)),
        compiler_params=pltpu.CompilerParams(
            dimension_semantics=("parallel",),
            vmem_limit_bytes=40 * 1024 * 1024),
        cost_estimate=pl.CostEstimate(
            flops=flops, transcendentals=b, bytes_accessed=bytes_accessed),
    )(x, w1, b1, w2, b2, w3, b3)


def init_params(key):
    """Deterministic init mimicking nn.Linear default (U[-1/sqrt(fan_in), +])."""
    def linear(key, fan_in, fan_out):
        kw, kb = jax.random.split(key)
        bound = 1.0 / jnp.sqrt(fan_in)
        w = jax.random.uniform(kw, (fan_in, fan_out), jnp.float32, -bound, bound)
        b = jax.random.uniform(kb, (fan_out,), jnp.float32, -bound, bound)
        return w, b

    k1, k2, k3 = jax.random.split(key, 3)
    w1, b1 = linear(k1, IN_DIM, H1)
    w2, b2 = linear(k2, H1, H2)
    w3, b3 = linear(k3, H2, OUT_DIM)
    return (w1, b1, w2, b2, w3, b3)


def _reference_forward(img, params):
    """Pure-JAX f32 reference for sanity checking."""
    w1, b1, w2, b2, w3, b3 = params
    x = img.reshape(img.shape[0], -1)
    h = x @ w1 + b1
    h = jnp.where(h > 0, h, 0.2 * h)
    h = h @ w2 + b2
    h = jnp.where(h > 0, h, 0.2 * h)
    h = h @ w3 + b3
    return jax.nn.sigmoid(h)


if __name__ == "__main__":
    key = jax.random.PRNGKey(0)
    k_param, k_img = jax.random.split(key)

    params = init_params(k_param)
    prepared = prepare_params(params)

    batch = 2
    img = jax.random.normal(k_img, (batch,) + IMG_SHAPE, dtype=jnp.float32)

    validity = discriminator_forward(img, prepared)
    validity = jax.block_until_ready(validity)

    ref = _reference_forward(img, params)
    assert validity.shape == (batch, OUT_DIM), validity.shape
    # bf16 weights/activations -> loose but meaningful tolerance vs f32 reference.
    assert jnp.allclose(validity, ref, atol=1e-2, rtol=1e-2), (validity, ref)

    print("KERNEL_OK")
</pallas_src>

<mosaic_0001>
module attributes {stable_mosaic.version = 11 : i64} {
  func.func @_discriminator_kernel(%arg0: i32, %arg1: memref<8x784xf32, #tpu.memory_space<vmem>>, %arg2: memref<784x512xbf16, #tpu.memory_space<vmem>>, %arg3: memref<1x512xf32, #tpu.memory_space<vmem>>, %arg4: memref<512x256xbf16, #tpu.memory_space<vmem>>, %arg5: memref<1x256xf32, #tpu.memory_space<vmem>>, %arg6: memref<1x256xf32, #tpu.memory_space<vmem>>, %arg7: memref<1x1xf32, #tpu.memory_space<vmem>>, %arg8: memref<8x1xf32, #tpu.memory_space<vmem>>) attributes {dimension_semantics = [#tpu.dimension_semantics<parallel>], iteration_bounds = array<i64: 1>, scalar_prefetch = 0 : i64, scratch_operands = 0 : i64, tpu.core_type = #tpu.core_type<tc>, window_params = [{transform_indices = @transform_0, window_bounds = array<i64: 8, 784>}, {pipeline_mode = #tpu.pipeline_mode<synchronous>, transform_indices = @transform_1, window_bounds = array<i64: 784, 512>}, {pipeline_mode = #tpu.pipeline_mode<synchronous>, transform_indices = @transform_2, window_bounds = array<i64: 1, 512>}, {pipeline_mode = #tpu.pipeline_mode<synchronous>, transform_indices = @transform_3, window_bounds = array<i64: 512, 256>}, {pipeline_mode = #tpu.pipeline_mode<synchronous>, transform_indices = @transform_4, window_bounds = array<i64: 1, 256>}, {pipeline_mode = #tpu.pipeline_mode<synchronous>, transform_indices = @transform_5, window_bounds = array<i64: 1, 256>}, {pipeline_mode = #tpu.pipeline_mode<synchronous>, transform_indices = @transform_6, window_bounds = array<i64: 1, 1>}, {transform_indices = @transform_7, window_bounds = array<i64: 8, 1>}]} {
    %c0 = arith.constant 0 : index
    %c0_0 = arith.constant 0 : index
    %0 = vector.load %arg1[%c0, %c0_0] : memref<8x784xf32, #tpu.memory_space<vmem>>, vector<8x784xf32>
    %1 = arith.truncf %0 : vector<8x784xf32> to vector<8x784xbf16>
    %c0_1 = arith.constant 0 : index
    %c0_2 = arith.constant 0 : index
    %2 = vector.load %arg2[%c0_1, %c0_2] : memref<784x512xbf16, #tpu.memory_space<vmem>>, vector<784x512xbf16>
    %cst = arith.constant dense<0.000000e+00> : vector<8x512xf32>
    %3 = tpu.matmul %1, %2, %cst {dimension_numbers = #tpu.dot_dimension_numbers<[1], [0], [0], [1], [0, 0, 1, 1], [], []>} : vector<8x784xbf16>, vector<784x512xbf16>, vector<8x512xf32> -> vector<8x512xf32>
    %c0_3 = arith.constant 0 : index
    %c0_4 = arith.constant 0 : index
    %4 = vector.load %arg3[%c0_3, %c0_4] : memref<1x512xf32, #tpu.memory_space<vmem>>, vector<1x512xf32>
    %5 = vector.broadcast %4 : vector<1x512xf32> to vector<8x512xf32>
    %6 = arith.addf %3, %5 : vector<8x512xf32>
    %cst_5 = arith.constant 2.000000e-01 : f32
    %7 = vector.broadcast %cst_5 : f32 to vector<8x512xf32>
    %8 = arith.mulf %7, %6 : vector<8x512xf32>
    %9 = arith.maximumf %6, %8 : vector<8x512xf32>
    %10 = arith.truncf %9 : vector<8x512xf32> to vector<8x512xbf16>
    %c0_6 = arith.constant 0 : index
    %c0_7 = arith.constant 0 : index
    %11 = vector.load %arg4[%c0_6, %c0_7] : memref<512x256xbf16, #tpu.memory_space<vmem>>, vector<512x256xbf16>
    %cst_8 = arith.constant dense<0.000000e+00> : vector<8x256xf32>
    %12 = tpu.matmul %10, %11, %cst_8 {dimension_numbers = #tpu.dot_dimension_numbers<[1], [0], [0], [1], [0, 0, 1, 1], [], []>} : vector<8x512xbf16>, vector<512x256xbf16>, vector<8x256xf32> -> vector<8x256xf32>
    %c0_9 = arith.constant 0 : index
    %c0_10 = arith.constant 0 : index
    %13 = vector.load %arg5[%c0_9, %c0_10] : memref<1x256xf32, #tpu.memory_space<vmem>>, vector<1x256xf32>
    %14 = vector.broadcast %13 : vector<1x256xf32> to vector<8x256xf32>
    %15 = arith.addf %12, %14 : vector<8x256xf32>
    %cst_11 = arith.constant 2.000000e-01 : f32
    %16 = vector.broadcast %cst_11 : f32 to vector<8x256xf32>
    %17 = arith.mulf %16, %15 : vector<8x256xf32>
    %18 = arith.maximumf %15, %17 : vector<8x256xf32>
    %c0_12 = arith.constant 0 : index
    %c0_13 = arith.constant 0 : index
    %19 = vector.load %arg6[%c0_12, %c0_13] : memref<1x256xf32, #tpu.memory_space<vmem>>, vector<1x256xf32>
    %20 = vector.broadcast %19 : vector<1x256xf32> to vector<8x256xf32>
    %21 = arith.mulf %18, %20 : vector<8x256xf32>
    %cst_14 = arith.constant dense<0.000000e+00> : vector<8xf32>
    %22 = vector.multi_reduction <add>, %21, %cst_14 [1] : vector<8x256xf32> to vector<8xf32>
    %23 = vector.shape_cast %22 : vector<8xf32> to vector<8x1xf32>
    %c0_15 = arith.constant 0 : index
    %c0_16 = arith.constant 0 : index
    %24 = vector.load %arg7[%c0_15, %c0_16] : memref<1x1xf32, #tpu.memory_space<vmem>>, vector<1x1xf32>
    %25 = vector.broadcast %24 : vector<1x1xf32> to vector<8x1xf32>
    %26 = arith.addf %23, %25 : vector<8x1xf32>
    %27 = math.absf %26 : vector<8x1xf32>
    %cst_17 = arith.constant 0.000000e+00 : f32
    %28 = vector.broadcast %cst_17 : f32 to vector<8x1xf32>
    %29 = arith.subf %28, %27 : vector<8x1xf32>
    %30 = math.exp %29 : vector<8x1xf32>
    %cst_18 = arith.constant 1.000000e+00 : f32
    %31 = vector.broadcast %cst_18 : f32 to vector<8x1xf32>
    %32 = arith.addf %31, %30 : vector<8x1xf32>
    %33 = tpu.reciprocal %32 : vector<8x1xf32> -> vector<8x1xf32>
    %cst_19 = arith.constant 0.000000e+00 : f32
    %34 = vector.broadcast %cst_19 : f32 to vector<8x1xf32>
    %35 = arith.cmpf oge, %26, %34 : vector<8x1xf32>
    %36 = arith.mulf %30, %33 : vector<8x1xf32>
    %37 = arith.select %35, %33, %36 : vector<8x1xi1>, vector<8x1xf32>
    %c0_20 = arith.constant 0 : index
    %c0_21 = arith.constant 0 : index
    %38 = vector.load %arg8[%c0_20, %c0_21] : memref<8x1xf32, #tpu.memory_space<vmem>>, vector<8x1xf32>
    tpu.vector_store %arg8[%c0_20, %c0_21], %37 {strides = array<i32>} : memref<8x1xf32, #tpu.memory_space<vmem>>, vector<8x1xf32>,
    return
  }
  func.func @transform_0(%arg0: i32) -> (i32, i32) {
    %c0_i32 = arith.constant 0 : i32
    %c0_i32_0 = arith.constant 0 : i32
    return %arg0, %c0_i32 : i32, i32
  }
  func.func @transform_1(%arg0: i32) -> (i32, i32) {
    %c0_i32 = arith.constant 0 : i32
    %c0_i32_0 = arith.constant 0 : i32
    %c0_i32_1 = arith.constant 0 : i32
    return %c0_i32, %c0_i32_0 : i32, i32
  }
  func.func @transform_2(%arg0: i32) -> (i32, i32) {
    %c0_i32 = arith.constant 0 : i32
    %c0_i32_0 = arith.constant 0 : i32
    %c0_i32_1 = arith.constant 0 : i32
    return %c0_i32, %c0_i32_0 : i32, i32
  }
  func.func @transform_3(%arg0: i32) -> (i32, i32) {
    %c0_i32 = arith.constant 0 : i32
    %c0_i32_0 = arith.constant 0 : i32
    %c0_i32_1 = arith.constant 0 : i32
    return %c0_i32, %c0_i32_0 : i32, i32
  }
  func.func @transform_4(%arg0: i32) -> (i32, i32) {
    %c0_i32 = arith.constant 0 : i32
    %c0_i32_0 = arith.constant 0 : i32
    %c0_i32_1 = arith.constant 0 : i32
    return %c0_i32, %c0_i32_0 : i32, i32
  }
  func.func @transform_5(%arg0: i32) -> (i32, i32) {
    %c0_i32 = arith.constant 0 : i32
    %c0_i32_0 = arith.constant 0 : i32
    %c0_i32_1 = arith.constant 0 : i32
    return %c0_i32, %c0_i32_0 : i32, i32
  }
  func.func @transform_6(%arg0: i32) -> (i32, i32) {
    %c0_i32 = arith.constant 0 : i32
    %c0_i32_0 = arith.constant 0 : i32
    %c0_i32_1 = arith.constant 0 : i32
    return %c0_i32, %c0_i32_0 : i32, i32
  }
  func.func @transform_7(%arg0: i32) -> (i32, i32) {
    %c0_i32 = arith.constant 0 : i32
    %c0_i32_0 = arith.constant 0 : i32
    return %arg0, %c0_i32 : i32, i32
  }
}

</mosaic_0001>

<llo_original>
// kernel: discriminator_forward.1
$region0: #{discriminator_forward.1}
  #allocation0 [shape = 'u32[]', space=smem, size = 0x4, offset = 0x4, fixed_abs, tag = 'smem constant byte address 0x4 - core index']
  #allocation1 [shape = 'u32[72,128]{1,0:T(1,128)}', space=vmem, size = 0x9000, scoped, tag = 'internal scratch']
  #allocation2 [shape = 'f32[1,1]{1,0:T(1,128)S(1)}', space=vmem, size = 0x200, scoped, tag = 'scoped memory for discriminator_forward.1']
  %s0 = inlined_call_operand.vmem [shape: f32[2,784], index: 0, kind: input, shape index: {}]
  %s1 = inlined_call_operand.hbm [shape: bf16[784,512], index: 1, kind: input, shape index: {}]
  %s2 = inlined_call_operand.vmem [shape: f32[1,512], index: 2, kind: input, shape index: {}]
  %s3 = inlined_call_operand.hbm [shape: bf16[512,256], index: 3, kind: input, shape index: {}]
  %s4 = inlined_call_operand.vmem [shape: f32[1,256], index: 4, kind: input, shape index: {}]
  %s5 = inlined_call_operand.vmem [shape: f32[1,256], index: 5, kind: input, shape index: {}]
  %s6 = inlined_call_operand.<no memory space> [shape: f32[1,1], index: 6, kind: input, shape index: {}]
  %s7 = inlined_call_operand.vmem [shape: f32[2,1], index: 7, kind: output, shape index: {}]
  %s8 = sld [smem:[#allocation0]]
  $region76: #{discriminator_forward.1} parent=0
    _
  %s10 = ssub.s32 1, %s8
  %s11 = scalar_select 0, %s10, %s8
  %v12 = vstv %s6
  %13 = vst [vmem:[#allocation2] sm:$0x1] %v12
  $region1: #{discriminator_forward.1} parent=0
    #allocation3 [shape = 'u8[802816]{0}', space=vmem, size = 0xc4000, scoped, tag = 'input window, operand 1, single buffered']
    #allocation4 [shape = 's32[1]{0}', space=sflag, size = 0x4, scoped, tag = 'scoped memory for discriminator_forward.1']
    #allocation5 [shape = 'u8[262144]{0}', space=vmem, size = 0x40000, scoped, tag = 'input window, operand 3, single buffered']
    #allocation6 [shape = 's32[1]{0}', space=sflag, size = 0x4, scoped, tag = 'scoped memory for discriminator_forward.1']
    #allocation7 [shape = 'u8[4096]{0}', space=vmem, size = 0x1000, scoped, tag = 'output window, operand 0, single buffered']
    %14 = vsyncpa [#allocation4], 0
    %15 = vsyncpa [#allocation6], 0
    // Predicated region
    $region2: #{discriminator_forward.1} parent=1 // pred_check
      _
    $region3: #{discriminator_forward.1} parent=1 // pred_check_branch
      %17 = sbr.rel (0) target = $region5
    $region4: #{discriminator_forward.1} parent=1 // pred_region
      _
    $region5: #{discriminator_forward.1} parent=1 // pred_fallthru
      _
    // Predicated region
    $region6: #{discriminator_forward.1} parent=1 // pred_check
      _
    $region7: #{discriminator_forward.1} parent=1 // pred_check_branch
      %19 = sbr.rel (0) target = $region9
    $region8: #{discriminator_forward.1} parent=1 // pred_region
      %21 = vsyncadd [#allocation4], 0
      %s22 = sshll.u32 %s1, 4
      %s23 = int_to_ptr.hbm [resolvable:$true] %s22
      %s24 = sshll.u32 [#allocation3], 4
      %s25 = int_to_ptr.vmem [resolvable:$true] %s24
      %30 = dma.hbm_to_vmem [thread:$0]  %s23, 25088, %s25, [#allocation4], 256, 256, 16
    $region9: #{discriminator_forward.1} parent=1 // pred_fallthru
      _
    // Predicated region
    $region10: #{discriminator_forward.1} parent=1 // pred_check
      _
    $region11: #{discriminator_forward.1} parent=1 // pred_check_branch
      %32 = sbr.rel (0) target = $region13
    $region12: #{discriminator_forward.1} parent=1 // pred_region
      _
    $region13: #{discriminator_forward.1} parent=1 // pred_fallthru
      _
    // Predicated region
    $region14: #{discriminator_forward.1} parent=1 // pred_check
      _
    $region15: #{discriminator_forward.1} parent=1 // pred_check_branch
      %34 = sbr.rel (0) target = $region17
    $region16: #{discriminator_forward.1} parent=1 // pred_region
      %36 = vsyncadd [#allocation6], 0
      %s37 = sshll.u32 %s3, 4
      %s38 = int_to_ptr.hbm [resolvable:$true] %s37
      %s39 = sshll.u32 [#allocation5], 4
      %s40 = int_to_ptr.vmem [resolvable:$true] %s39
      %45 = dma.hbm_to_vmem [thread:$0]  %s38, 8192, %s40, [#allocation6], 128, 128, 8
    $region17: #{discriminator_forward.1} parent=1 // pred_fallthru
      _
    // Predicated region
    $region18: #{discriminator_forward.1} parent=1 // pred_check
      _
    $region19: #{discriminator_forward.1} parent=1 // pred_check_branch
      %47 = sbr.rel (0) target = $region21
    $region20: #{discriminator_forward.1} parent=1 // pred_region
      _
    $region21: #{discriminator_forward.1} parent=1 // pred_fallthru
      _
    // Predicated region
    $region22: #{discriminator_forward.1} parent=1 // pred_check
      _
    $region23: #{discriminator_forward.1} parent=1 // pred_check_branch
      %49 = sbr.rel (0) target = $region25
    $region24: #{discriminator_forward.1} parent=1 // pred_region
      _
    $region25: #{discriminator_forward.1} parent=1 // pred_fallthru
      _
    // Predicated region
    $region26: #{discriminator_forward.1} parent=1 // pred_check
      _
    $region27: #{discriminator_forward.1} parent=1 // pred_check_branch
      %51 = sbr.rel (0) target = $region29
    $region28: #{discriminator_forward.1} parent=1 // pred_region
      _
    $region29: #{discriminator_forward.1} parent=1 // pred_fallthru
      _
    // Predicated region
    $region30: #{discriminator_forward.1} parent=1 // pred_check
      _
    $region31: #{discriminator_forward.1} parent=1 // pred_check_branch
      %53 = sbr.rel (0) target = $region33
    $region32: #{discriminator_forward.1} parent=1 // pred_region
      %55 = dma.done [#allocation4], 25088
    $region33: #{discriminator_forward.1} parent=1 // pred_fallthru
      _
    // Predicated region
    $region34: #{discriminator_forward.1} parent=1 // pred_check
      _
    $region35: #{discriminator_forward.1} parent=1 // pred_check_branch
      %57 = sbr.rel (0) target = $region37
    $region36: #{discriminator_forward.1} parent=1 // pred_region
      %59 = dma.done [#allocation6], 8192
    $region37: #{discriminator_forward.1} parent=1 // pred_fallthru
      _
    %v61 = vld [vmem:[%s0] sm:$0xff]
    %v62 = vld [vmem:[%s0 + $0x8] sm:$0x3f]
    %v63 = vld [vmem:[%s0 + $0xe] sm:$0xff]
    %v64 = vld [vmem:[%s0 + $0x16] sm:$0x3f]
    %v65 = vld [vmem:[%s0 + $0x1c] sm:$0xff]
    %v66 = vld [vmem:[%s0 + $0x24] sm:$0x3f]
    %v67 = vld [vmem:[%s0 + $0x2a] sm:$0xff]
    %v68 = vld [vmem:[%s0 + $0x32] sm:$0x3f]
    %77 = vst [vmem:[#allocation1] ss:$4 sm:$0xff] %v61
    %s78 = scalar_lea.vmem [#allocation1], 1
    %79 = vst [vmem:[%s78] ss:$4 sm:$0xff] %v63
    %s80 = scalar_lea.vmem [#allocation1], 2
    %81 = vst [vmem:[%s80] ss:$4 sm:$0xff] %v65
    %s82 = scalar_lea.vmem [#allocation1], 3
    %83 = vst [vmem:[%s82] ss:$4 sm:$0xff] %v67
    %s84 = scalar_lea.vmem [#allocation1], 32
    %85 = vst [vmem:[%s84] ss:$4 sm:$0xff] %v62
    %s86 = scalar_lea.vmem [#allocation1], 33
    %87 = vst [vmem:[%s86] ss:$4 sm:$0xff] %v64
    %s88 = scalar_lea.vmem [#allocation1], 34
    %89 = vst [vmem:[%s88] ss:$4 sm:$0xff] %v66
    %s90 = scalar_lea.vmem [#allocation1], 35
    %91 = vst [vmem:[%s90] ss:$4 sm:$0xff] %v68
    %v92 = vld.sshfl [vmem:[#allocation1] sm:$0xff pattern:$0x73625140]
    %v93 = vld.sshfl [vmem:[#allocation1 + $0x8] sm:$0xff pattern:$0x73625140]
    %v94 = vld.sshfl [vmem:[#allocation1 + $0x10] sm:$0xff pattern:$0x73625140]
    %v95 = vld.sshfl [vmem:[#allocation1 + $0x18] sm:$0xff pattern:$0x73625140]
    %v96 = vld.sshfl [vmem:[#allocation1 + $0x20] sm:$0xff pattern:$0x73625140]
    %v97 = vld.sshfl [vmem:[#allocation1 + $0x28] sm:$0xff pattern:$0x73625140]
    %v98 = vld.sshfl [vmem:[#allocation1 + $0x30] sm:$0xff pattern:$0x73625140]
    %v106 = vpack.c.bf16 %v92, %v92
    %v107 = vpack.c.bf16 %v93, %v93
    %v108 = vpack.c.bf16 %v94, %v94
    %v109 = vpack.c.bf16 %v95, %v95
    %v110 = vpack.c.bf16 %v96, %v96
    %v111 = vpack.c.bf16 %v97, %v97
    %v112 = vpack.c.bf16 %v98, %v98
    %v113 = vld [vmem:[#allocation3] sm:$0xff]
    %v114 = vld [vmem:[#allocation3 + $0x8] sm:$0xff]
    %v115 = vld [vmem:[#allocation3 + $0x10] sm:$0xff]
    %v116 = vld [vmem:[#allocation3 + $0x18] sm:$0xff]
    %v117 = vld [vmem:[#allocation3 + $0x20] sm:$0xff]
    %v118 = vld [vmem:[#allocation3 + $0x28] sm:$0xff]
    %v119 = vld [vmem:[#allocation3 + $0x30] sm:$0xff]
    %v120 = vld [vmem:[#allocation3 + $0x38] sm:$0xff]
    %v121 = vld [vmem:[#allocation3 + $0x40] sm:$0xff]
    %v122 = vld [vmem:[#allocation3 + $0x48] sm:$0xff]
    %v123 = vld [vmem:[#allocation3 + $0x50] sm:$0xff]
    %v124 = vld [vmem:[#allocation3 + $0x58] sm:$0xff]
    %v125 = vld [vmem:[#allocation3 + $0x60] sm:$0xff]
    %v126 = vld [vmem:[#allocation3 + $0x68] sm:$0xff]
    %v127 = vld [vmem:[#allocation3 + $0x70] sm:$0xff]
    %v128 = vld [vmem:[#allocation3 + $0x78] sm:$0xff]
    %v129 = vld [vmem:[#allocation3 + $0x80] sm:$0xff]
    %v130 = vld [vmem:[#allocation3 + $0x88] sm:$0xff]
    %v131 = vld [vmem:[#allocation3 + $0x90] sm:$0xff]
    %v132 = vld [vmem:[#allocation3 + $0x98] sm:$0xff]
    %v133 = vld [vmem:[#allocation3 + $0xa0] sm:$0xff]
    %v134 = vld [vmem:[#allocation3 + $0xa8] sm:$0xff]
    %v135 = vld [vmem:[#allocation3 + $0xb0] sm:$0xff]
    %v136 = vld [vmem:[#allocation3 + $0xb8] sm:$0xff]
    %v137 = vld [vmem:[#allocation3 + $0xc0] sm:$0xff]
    %v138 = vld [vmem:[#allocation3 + $0xc8] sm:$0xff]
    %v139 = vld [vmem:[#allocation3 + $0xd0] sm:$0xff]
    %v140 = vld [vmem:[#allocation3 + $0xd8] sm:$0xff]
    %v141 = vld [vmem:[#allocation3 + $0xe0] sm:$0xff]
    %v142 = vld [vmem:[#allocation3 + $0xe8] sm:$0xff]
    %v143 = vld [vmem:[#allocation3 + $0xf0] sm:$0xff]
    %v144 = vld [vmem:[#allocation3 + $0xf8] sm:$0xff]
    %v145 = vld [vmem:[#allocation3 + $0x100] sm:$0xff]
    %v146 = vld [vmem:[#allocation3 + $0x108] sm:$0xff]
    %v147 = vld [vmem:[#allocation3 + $0x110] sm:$0xff]
    %v148 = vld [vmem:[#allocation3 + $0x118] sm:$0xff]
    %v149 = vld [vmem:[#allocation3 + $0x120] sm:$0xff]
    %v150 = vld [vmem:[#allocation3 + $0x128] sm:$0xff]
    %v151 = vld [vmem:[#allocation3 + $0x130] sm:$0xff]
    %v152 = vld [vmem:[#allocation3 + $0x138] sm:$0xff]
    %v153 = vld [vmem:[#allocation3 + $0x140] sm:$0xff]
    %v154 = vld [vmem:[#allocation3 + $0x148] sm:$0xff]
    %v155 = vld [vmem:[#allocation3 + $0x150] sm:$0xff]
    %v156 = vld [vmem:[#allocation3 + $0x158] sm:$0xff]
    %v157 = vld [vmem:[#allocation3 + $0x160] sm:$0xff]
    %v158 = vld [vmem:[#allocation3 + $0x168] sm:$0xff]
    %v159 = vld [vmem:[#allocation3 + $0x170] sm:$0xff]
    %v160 = vld [vmem:[#allocation3 + $0x178] sm:$0xff]
    %v161 = vld [vmem:[#allocation3 + $0x180] sm:$0xff]
    %v162 = vld [vmem:[#allocation3 + $0x188] sm:$0xff]
    %v163 = vld [vmem:[#allocation3 + $0x190] sm:$0xff]
    %v164 = vld [vmem:[#allocation3 + $0x198] sm:$0xff]
    %v165 = vld [vmem:[#allocation3 + $0x1a0] sm:$0xff]
    %v166 = vld [vmem:[#allocation3 + $0x1a8] sm:$0xff]
    %v167 = vld [vmem:[#allocation3 + $0x1b0] sm:$0xff]
    %v168 = vld [vmem:[#allocation3 + $0x1b8] sm:$0xff]
    %v169 = vld [vmem:[#allocation3 + $0x1c0] sm:$0xff]
    %v170 = vld [vmem:[#allocation3 + $0x1c8] sm:$0xff]
    %v171 = vld [vmem:[#allocation3 + $0x1d0] sm:$0xff]
    %v172 = vld [vmem:[#allocation3 + $0x1d8] sm:$0xff]
    %v173 = vld [vmem:[#allocation3 + $0x1e0] sm:$0xff]
    %v174 = vld [vmem:[#allocation3 + $0x1e8] sm:$0xff]
    %v175 = vld [vmem:[#allocation3 + $0x1f0] sm:$0xff]
    %v176 = vld [vmem:[#allocation3 + $0x1f8] sm:$0xff]
    %v177 = vld [vmem:[#allocation3 + $0x200] sm:$0xff]
    %v178 = vld [vmem:[#allocation3 + $0x208] sm:$0xff]
    %v179 = vld [vmem:[#allocation3 + $0x210] sm:$0xff]
    %v180 = vld [vmem:[#allocation3 + $0x218] sm:$0xff]
    %v181 = vld [vmem:[#allocation3 + $0x220] sm:$0xff]
    %v182 = vld [vmem:[#allocation3 + $0x228] sm:$0xff]
    %v183 = vld [vmem:[#allocation3 + $0x230] sm:$0xff]
    %v184 = vld [vmem:[#allocation3 + $0x238] sm:$0xff]
    %v185 = vld [vmem:[#allocation3 + $0x240] sm:$0xff]
    %v186 = vld [vmem:[#allocation3 + $0x248] sm:$0xff]
    %v187 = vld [vmem:[#allocation3 + $0x250] sm:$0xff]
    %v188 = vld [vmem:[#allocation3 + $0x258] sm:$0xff]
    %v189 = vld [vmem:[#allocation3 + $0x260] sm:$0xff]
    %v190 = vld [vmem:[#allocation3 + $0x268] sm:$0xff]
    %v191 = vld [vmem:[#allocation3 + $0x270] sm:$0xff]
    %v192 = vld [vmem:[#allocation3 + $0x278] sm:$0xff]
    %v193 = vld [vmem:[#allocation3 + $0x280] sm:$0xff]
    %v194 = vld [vmem:[#allocation3 + $0x288] sm:$0xff]
    %v195 = vld [vmem:[#allocation3 + $0x290] sm:$0xff]
    %v196 = vld [vmem:[#allocation3 + $0x298] sm:$0xff]
    %v197 = vld [vmem:[#allocation3 + $0x2a0] sm:$0xff]
    %v198 = vld [vmem:[#allocation3 + $0x2a8] sm:$0xff]
    %v199 = vld [vmem:[#allocation3 + $0x2b0] sm:$0xff]
    %v200 = vld [vmem:[#allocation3 + $0x2b8] sm:$0xff]
    %v201 = vld [vmem:[#allocation3 + $0x2c0] sm:$0xff]
    %v202 = vld [vmem:[#allocation3 + $0x2c8] sm:$0xff]
    %v203 = vld [vmem:[#allocation3 + $0x2d0] sm:$0xff]
    %v204 = vld [vmem:[#allocation3 + $0x2d8] sm:$0xff]
    %v205 = vld [vmem:[#allocation3 + $0x2e0] sm:$0xff]
    %v206 = vld [vmem:[#allocation3 + $0x2e8] sm:$0xff]
    %v207 = vld [vmem:[#allocation3 + $0x2f0] sm:$0xff]
    %v208 = vld [vmem:[#allocation3 + $0x2f8] sm:$0xff]
    %v209 = vld [vmem:[#allocation3 + $0x300] sm:$0xff]
    %v210 = vld [vmem:[#allocation3 + $0x308] sm:$0xff]
    %v211 = vld [vmem:[#allocation3 + $0x310] sm:$0xff]
    %v212 = vld [vmem:[#allocation3 + $0x318] sm:$0xff]
    %v213 = vld [vmem:[#allocation3 + $0x320] sm:$0xff]
    %v214 = vld [vmem:[#allocation3 + $0x328] sm:$0xff]
    %v215 = vld [vmem:[#allocation3 + $0x330] sm:$0xff]
    %v216 = vld [vmem:[#allocation3 + $0x338] sm:$0xff]
    %v217 = vld [vmem:[#allocation3 + $0x340] sm:$0xff]
    %v218 = vld [vmem:[#allocation3 + $0x348] sm:$0xff]
    %v219 = vld [vmem:[#allocation3 + $0x350] sm:$0xff]
    %v220 = vld [vmem:[#allocation3 + $0x358] sm:$0xff]
    %v221 = vld [vmem:[#allocation3 + $0x360] sm:$0xff]
    %v222 = vld [vmem:[#allocation3 + $0x368] sm:$0xff]
    %v223 = vld [vmem:[#allocation3 + $0x370] sm:$0xff]
    %v224 = vld [vmem:[#allocation3 + $0x378] sm:$0xff]
    %v225 = vld [vmem:[#allocation3 + $0x380] sm:$0xff]
    %v226 = vld [vmem:[#allocation3 + $0x388] sm:$0xff]
    %v227 = vld [vmem:[#allocation3 + $0x390] sm:$0xff]
    %v228 = vld [vmem:[#allocation3 + $0x398] sm:$0xff]
    %v229 = vld [vmem:[#allocation3 + $0x3a0] sm:$0xff]
    %v230 = vld [vmem:[#allocation3 + $0x3a8] sm:$0xff]
    %v231 = vld [vmem:[#allocation3 + $0x3b0] sm:$0xff]
    %v232 = vld [vmem:[#allocation3 + $0x3b8] sm:$0xff]
    %v233 = vld [vmem:[#allocation3 + $0x3c0] sm:$0xff]
    %v234 = vld [vmem:[#allocation3 + $0x3c8] sm:$0xff]
    %v235 = vld [vmem:[#allocation3 + $0x3d0] sm:$0xff]
    %v236 = vld [vmem:[#allocation3 + $0x3d8] sm:$0xff]
    %v237 = vld [vmem:[#allocation3 + $0x3e0] sm:$0xff]
    %v238 = vld [vmem:[#allocation3 + $0x3e8] sm:$0xff]
    %v239 = vld [vmem:[#allocation3 + $0x3f0] sm:$0xff]
    %v240 = vld [vmem:[#allocation3 + $0x3f8] sm:$0xff]
    %v241 = vld [vmem:[#allocation3 + $0x400] sm:$0xff]
    %v242 = vld [vmem:[#allocation3 + $0x408] sm:$0xff]
    %v243 = vld [vmem:[#allocation3 + $0x410] sm:$0xff]
    %v244 = vld [vmem:[#allocation3 + $0x418] sm:$0xff]
    %v245 = vld [vmem:[#allocation3 + $0x420] sm:$0xff]
    %v246 = vld [vmem:[#allocation3 + $0x428] sm:$0xff]
    %v247 = vld [vmem:[#allocation3 + $0x430] sm:$0xff]
    %v248 = vld [vmem:[#allocation3 + $0x438] sm:$0xff]
    %v249 = vld [vmem:[#allocation3 + $0x440] sm:$0xff]
    %v250 = vld [vmem:[#allocation3 + $0x448] sm:$0xff]
    %v251 = vld [vmem:[#allocation3 + $0x450] sm:$0xff]
    %v252 = vld [vmem:[#allocation3 + $0x458] sm:$0xff]
    %v253 = vld [vmem:[#allocation3 + $0x460] sm:$0xff]
    %v254 = vld [vmem:[#allocation3 + $0x468] sm:$0xff]
    %v255 = vld [vmem:[#allocation3 + $0x470] sm:$0xff]
    %v256 = vld [vmem:[#allocation3 + $0x478] sm:$0xff]
    %v257 = vld [vmem:[#allocation3 + $0x480] sm:$0xff]
    %v258 = vld [vmem:[#allocation3 + $0x488] sm:$0xff]
    %v259 = vld [vmem:[#allocation3 + $0x490] sm:$0xff]
    %v260 = vld [vmem:[#allocation3 + $0x498] sm:$0xff]
    %v261 = vld [vmem:[#allocation3 + $0x4a0] sm:$0xff]
    %v262 = vld [vmem:[#allocation3 + $0x4a8] sm:$0xff]
    %v263 = vld [vmem:[#allocation3 + $0x4b0] sm:$0xff]
    %v264 = vld [vmem:[#allocation3 + $0x4b8] sm:$0xff]
    %v265 = vld [vmem:[#allocation3 + $0x4c0] sm:$0xff]
    %v266 = vld [vmem:[#allocation3 + $0x4c8] sm:$0xff]
    %v267 = vld [vmem:[#allocation3 + $0x4d0] sm:$0xff]
    %v268 = vld [vmem:[#allocation3 + $0x4d8] sm:$0xff]
    %v269 = vld [vmem:[#allocation3 + $0x4e0] sm:$0xff]
    %v270 = vld [vmem:[#allocation3 + $0x4e8] sm:$0xff]
    %v271 = vld [vmem:[#allocation3 + $0x4f0] sm:$0xff]
    %v272 = vld [vmem:[#allocation3 + $0x4f8] sm:$0xff]
    %v273 = vld [vmem:[#allocation3 + $0x500] sm:$0xff]
    %v274 = vld [vmem:[#allocation3 + $0x508] sm:$0xff]
    %v275 = vld [vmem:[#allocation3 + $0x510] sm:$0xff]
    %v276 = vld [vmem:[#allocation3 + $0x518] sm:$0xff]
    %v277 = vld [vmem:[#allocation3 + $0x520] sm:$0xff]
    %v278 = vld [vmem:[#allocation3 + $0x528] sm:$0xff]
    %v279 = vld [vmem:[#allocation3 + $0x530] sm:$0xff]
    %v280 = vld [vmem:[#allocation3 + $0x538] sm:$0xff]
    %v281 = vld [vmem:[#allocation3 + $0x540] sm:$0xff]
    %v282 = vld [vmem:[#allocation3 + $0x548] sm:$0xff]
    %v283 = vld [vmem:[#allocation3 + $0x550] sm:$0xff]
    %v284 = vld [vmem:[#allocation3 + $0x558] sm:$0xff]
    %v285 = vld [vmem:[#allocation3 + $0x560] sm:$0xff]
    %v286 = vld [vmem:[#allocation3 + $0x568] sm:$0xff]
    %v287 = vld [vmem:[#allocation3 + $0x570] sm:$0xff]
    %v288 = vld [vmem:[#allocation3 + $0x578] sm:$0xff]
    %v289 = vld [vmem:[#allocation3 + $0x580] sm:$0xff]
    %v290 = vld [vmem:[#allocation3 + $0x588] sm:$0xff]
    %v291 = vld [vmem:[#allocation3 + $0x590] sm:$0xff]
    %v292 = vld [vmem:[#allocation3 + $0x598] sm:$0xff]
    %v293 = vld [vmem:[#allocation3 + $0x5a0] sm:$0xff]
    %v294 = vld [vmem:[#allocation3 + $0x5a8] sm:$0xff]
    %v295 = vld [vmem:[#allocation3 + $0x5b0] sm:$0xff]
    %v296 = vld [vmem:[#allocation3 + $0x5b8] sm:$0xff]
    %v297 = vld [vmem:[#allocation3 + $0x5c0] sm:$0xff]
    %v298 = vld [vmem:[#allocation3 + $0x5c8] sm:$0xff]
    %v299 = vld [vmem:[#allocation3 + $0x5d0] sm:$0xff]
    %v300 = vld [vmem:[#allocation3 + $0x5d8] sm:$0xff]
    %v301 = vld [vmem:[#allocation3 + $0x5e0] sm:$0xff]
    %v302 = vld [vmem:[#allocation3 + $0x5e8] sm:$0xff]
    %v303 = vld [vmem:[#allocation3 + $0x5f0] sm:$0xff]
    %v304 = vld [vmem:[#allocation3 + $0x5f8] sm:$0xff]
    %v305 = vld [vmem:[#allocation3 + $0x600] sm:$0xff]
    %v306 = vld [vmem:[#allocation3 + $0x608] sm:$0xff]
    %v307 = vld [vmem:[#allocation3 + $0x610] sm:$0xff]
    %v308 = vld [vmem:[#allocation3 + $0x618] sm:$0xff]
    %v309 = vld [vmem:[%s2] sm:$0xf]
    %v311 = vperm.slane %v309, 0
    %v312 = vperm.slane %v309, 1
    %v313 = vperm.slane %v309, 2
    %v314 = vperm.slane %v309, 3
    %v515 = vunpack.c.l.b16 %v113
    %v516 = vunpack.c.h.b16 %v113
    %v517 = vunpack.c.l.b16 %v114
    %v518 = vunpack.c.h.b16 %v114
    %v519 = vunpack.c.l.b16 %v115
    %v520 = vunpack.c.h.b16 %v115
    %v521 = vunpack.c.l.b16 %v116
    %v522 = vunpack.c.h.b16 %v116
    %v523 = vunpack.c.l.b16 %v117
    %v524 = vunpack.c.h.b16 %v117
    %v525 = vunpack.c.l.b16 %v118
    %v526 = vunpack.c.h.b16 %v118
    %v527 = vunpack.c.l.b16 %v119
    %v528 = vunpack.c.h.b16 %v119
    %v529 = vunpack.c.l.b16 %v120
    %v530 = vunpack.c.h.b16 %v120
    %v531 = vunpack.c.l.b16 %v121
    %v532 = vunpack.c.h.b16 %v121
    %v533 = vunpack.c.l.b16 %v122
    %v534 = vunpack.c.h.b16 %v122
    %v535 = vunpack.c.l.b16 %v123
    %v536 = vunpack.c.h.b16 %v123
    %v537 = vunpack.c.l.b16 %v124
    %v538 = vunpack.c.h.b16 %v124
    %v539 = vunpack.c.l.b16 %v125
    %v540 = vunpack.c.h.b16 %v125
    %v541 = vunpack.c.l.b16 %v126
    %v542 = vunpack.c.h.b16 %v126
    %v543 = vunpack.c.l.b16 %v127
    %v544 = vunpack.c.h.b16 %v127
    %v545 = vunpack.c.l.b16 %v128
    %v546 = vunpack.c.h.b16 %v128
    %v547 = vunpack.c.l.b16 %v129
    %v548 = vunpack.c.h.b16 %v129
    %v549 = vunpack.c.l.b16 %v130
    %v550 = vunpack.c.h.b16 %v130
    %v551 = vunpack.c.l.b16 %v131
    %v552 = vunpack.c.h.b16 %v131
    %v553 = vunpack.c.l.b16 %v132
    %v554 = vunpack.c.h.b16 %v132
    %v555 = vunpack.c.l.b16 %v133
    %v556 = vunpack.c.h.b16 %v133
    %v557 = vunpack.c.l.b16 %v134
    %v558 = vunpack.c.h.b16 %v134
    %v559 = vunpack.c.l.b16 %v135
    %v560 = vunpack.c.h.b16 %v135
    %v561 = vunpack.c.l.b16 %v136
    %v562 = vunpack.c.h.b16 %v136
    %v563 = vunpack.c.l.b16 %v137
    %v564 = vunpack.c.h.b16 %v137
    %v565 = vunpack.c.l.b16 %v138
    %v566 = vunpack.c.h.b16 %v138
    %v567 = vunpack.c.l.b16 %v139
    %v568 = vunpack.c.h.b16 %v139
    %v569 = vunpack.c.l.b16 %v140
    %v570 = vunpack.c.h.b16 %v140
    %v571 = vunpack.c.l.b16 %v141
    %v572 = vunpack.c.h.b16 %v141
    %v573 = vunpack.c.l.b16 %v142
    %v574 = vunpack.c.h.b16 %v142
    %v575 = vunpack.c.l.b16 %v143
    %v576 = vunpack.c.h.b16 %v143
    %v577 = vunpack.c.l.b16 %v144
    %v578 = vunpack.c.h.b16 %v144
    %v579 = vunpack.c.l.b16 %v145
    %v580 = vunpack.c.h.b16 %v145
    %v581 = vunpack.c.l.b16 %v146
    %v582 = vunpack.c.h.b16 %v146
    %v583 = vunpack.c.l.b16 %v147
    %v584 = vunpack.c.h.b16 %v147
    %v585 = vunpack.c.l.b16 %v148
    %v586 = vunpack.c.h.b16 %v148
    %v587 = vunpack.c.l.b16 %v149
    %v588 = vunpack.c.h.b16 %v149
    %v589 = vunpack.c.l.b16 %v150
    %v590 = vunpack.c.h.b16 %v150
    %v591 = vunpack.c.l.b16 %v151
    %v592 = vunpack.c.h.b16 %v151
    %v593 = vunpack.c.l.b16 %v152
    %v594 = vunpack.c.h.b16 %v152
    %v595 = vunpack.c.l.b16 %v153
    %v596 = vunpack.c.h.b16 %v153
    %v597 = vunpack.c.l.b16 %v154
    %v598 = vunpack.c.h.b16 %v154
    %v599 = vunpack.c.l.b16 %v155
    %v600 = vunpack.c.h.b16 %v155
    %v601 = vunpack.c.l.b16 %v156
    %v602 = vunpack.c.h.b16 %v156
    %v603 = vunpack.c.l.b16 %v157
    %v604 = vunpack.c.h.b16 %v157
    %v605 = vunpack.c.l.b16 %v158
    %v606 = vunpack.c.h.b16 %v158
    %v607 = vunpack.c.l.b16 %v159
    %v608 = vunpack.c.h.b16 %v159
    %v609 = vunpack.c.l.b16 %v160
    %v610 = vunpack.c.h.b16 %v160
    %v611 = vunpack.c.l.b16 %v161
    %v612 = vunpack.c.h.b16 %v161
    %v613 = vunpack.c.l.b16 %v162
    %v614 = vunpack.c.h.b16 %v162
    %v615 = vunpack.c.l.b16 %v163
    %v616 = vunpack.c.h.b16 %v163
    %v617 = vunpack.c.l.b16 %v164
    %v618 = vunpack.c.h.b16 %v164
    %v619 = vunpack.c.l.b16 %v165
    %v620 = vunpack.c.h.b16 %v165
    %v621 = vunpack.c.l.b16 %v166
    %v622 = vunpack.c.h.b16 %v166
    %v623 = vunpack.c.l.b16 %v167
    %v624 = vunpack.c.h.b16 %v167
    %v625 = vunpack.c.l.b16 %v168
    %v626 = vunpack.c.h.b16 %v168
    %v627 = vunpack.c.l.b16 %v169
    %v628 = vunpack.c.h.b16 %v169
    %v629 = vunpack.c.l.b16 %v170
    %v630 = vunpack.c.h.b16 %v170
    %v631 = vunpack.c.l.b16 %v171
    %v632 = vunpack.c.h.b16 %v171
    %v633 = vunpack.c.l.b16 %v172
    %v634 = vunpack.c.h.b16 %v172
    %v635 = vunpack.c.l.b16 %v173
    %v636 = vunpack.c.h.b16 %v173
    %v637 = vunpack.c.l.b16 %v174
    %v638 = vunpack.c.h.b16 %v174
    %v639 = vunpack.c.l.b16 %v175
    %v640 = vunpack.c.h.b16 %v175
    %v641 = vunpack.c.l.b16 %v176
    %v642 = vunpack.c.h.b16 %v176
    %v643 = vunpack.c.l.b16 %v177
    %v644 = vunpack.c.h.b16 %v177
    %v645 = vunpack.c.l.b16 %v178
    %v646 = vunpack.c.h.b16 %v178
    %v647 = vunpack.c.l.b16 %v179
    %v648 = vunpack.c.h.b16 %v179
    %v649 = vunpack.c.l.b16 %v180
    %v650 = vunpack.c.h.b16 %v180
    %v651 = vunpack.c.l.b16 %v181
    %v652 = vunpack.c.h.b16 %v181
    %v653 = vunpack.c.l.b16 %v182
    %v654 = vunpack.c.h.b16 %v182
    %v655 = vunpack.c.l.b16 %v183
    %v656 = vunpack.c.h.b16 %v183
    %v657 = vunpack.c.l.b16 %v184
    %v658 = vunpack.c.h.b16 %v184
    %v659 = vunpack.c.l.b16 %v185
    %v660 = vunpack.c.h.b16 %v185
    %v661 = vunpack.c.l.b16 %v186
    %v662 = vunpack.c.h.b16 %v186
    %v663 = vunpack.c.l.b16 %v187
    %v664 = vunpack.c.h.b16 %v187
    %v665 = vunpack.c.l.b16 %v188
    %v666 = vunpack.c.h.b16 %v188
    %v667 = vunpack.c.l.b16 %v189
    %v668 = vunpack.c.h.b16 %v189
    %v669 = vunpack.c.l.b16 %v190
    %v670 = vunpack.c.h.b16 %v190
    %v671 = vunpack.c.l.b16 %v191
    %v672 = vunpack.c.h.b16 %v191
    %v673 = vunpack.c.l.b16 %v192
    %v674 = vunpack.c.h.b16 %v192
    %v675 = vunpack.c.l.b16 %v193
    %v676 = vunpack.c.h.b16 %v193
    %v677 = vunpack.c.l.b16 %v194
    %v678 = vunpack.c.h.b16 %v194
    %v679 = vunpack.c.l.b16 %v195
    %v680 = vunpack.c.h.b16 %v195
    %v681 = vunpack.c.l.b16 %v196
    %v682 = vunpack.c.h.b16 %v196
    %v683 = vunpack.c.l.b16 %v197
    %v684 = vunpack.c.h.b16 %v197
    %v685 = vunpack.c.l.b16 %v198
    %v686 = vunpack.c.h.b16 %v198
    %v687 = vunpack.c.l.b16 %v199
    %v688 = vunpack.c.h.b16 %v199
    %v689 = vunpack.c.l.b16 %v200
    %v690 = vunpack.c.h.b16 %v200
    %v691 = vunpack.c.l.b16 %v201
    %v692 = vunpack.c.h.b16 %v201
    %v693 = vunpack.c.l.b16 %v202
    %v694 = vunpack.c.h.b16 %v202
    %v695 = vunpack.c.l.b16 %v203
    %v696 = vunpack.c.h.b16 %v203
    %v697 = vunpack.c.l.b16 %v204
    %v698 = vunpack.c.h.b16 %v204
    %v699 = vunpack.c.l.b16 %v205
    %v700 = vunpack.c.h.b16 %v205
    %v701 = vunpack.c.l.b16 %v206
    %v702 = vunpack.c.h.b16 %v206
    %v703 = vunpack.c.l.b16 %v207
    %v704 = vunpack.c.h.b16 %v207
    %v705 = vunpack.c.l.b16 %v208
    %v706 = vunpack.c.h.b16 %v208
    %v707 = vunpack.c.l.b16 %v209
    %v708 = vunpack.c.h.b16 %v209
    %v709 = vunpack.c.l.b16 %v210
    %v710 = vunpack.c.h.b16 %v210
    %v711 = vunpack.c.l.b16 %v211
    %v712 = vunpack.c.h.b16 %v211
    %v713 = vunpack.c.l.b16 %v212
    %v714 = vunpack.c.h.b16 %v212
    %v715 = vunpack.c.l.b16 %v213
    %v716 = vunpack.c.h.b16 %v213
    %v717 = vunpack.c.l.b16 %v214
    %v718 = vunpack.c.h.b16 %v214
    %v719 = vunpack.c.l.b16 %v215
    %v720 = vunpack.c.h.b16 %v215
    %v721 = vunpack.c.l.b16 %v216
    %v722 = vunpack.c.h.b16 %v216
    %v723 = vunpack.c.l.b16 %v217
    %v724 = vunpack.c.h.b16 %v217
    %v725 = vunpack.c.l.b16 %v218
    %v726 = vunpack.c.h.b16 %v218
    %v727 = vunpack.c.l.b16 %v219
    %v728 = vunpack.c.h.b16 %v219
    %v729 = vunpack.c.l.b16 %v220
    %v730 = vunpack.c.h.b16 %v220
    %v731 = vunpack.c.l.b16 %v221
    %v732 = vunpack.c.h.b16 %v221
    %v733 = vunpack.c.l.b16 %v222
    %v734 = vunpack.c.h.b16 %v222
    %v735 = vunpack.c.l.b16 %v223
    %v736 = vunpack.c.h.b16 %v223
    %v737 = vunpack.c.l.b16 %v224
    %v738 = vunpack.c.h.b16 %v224
    %v739 = vunpack.c.l.b16 %v225
    %v740 = vunpack.c.h.b16 %v225
    %v741 = vunpack.c.l.b16 %v226
    %v742 = vunpack.c.h.b16 %v226
    %v743 = vunpack.c.l.b16 %v227
    %v744 = vunpack.c.h.b16 %v227
    %v745 = vunpack.c.l.b16 %v228
    %v746 = vunpack.c.h.b16 %v228
    %v747 = vunpack.c.l.b16 %v229
    %v748 = vunpack.c.h.b16 %v229
    %v749 = vunpack.c.l.b16 %v230
    %v750 = vunpack.c.h.b16 %v230
    %v751 = vunpack.c.l.b16 %v231
    %v752 = vunpack.c.h.b16 %v231
    %v753 = vunpack.c.l.b16 %v232
    %v754 = vunpack.c.h.b16 %v232
    %v755 = vunpack.c.l.b16 %v233
    %v756 = vunpack.c.h.b16 %v233
    %v757 = vunpack.c.l.b16 %v234
    %v758 = vunpack.c.h.b16 %v234
    %v759 = vunpack.c.l.b16 %v235
    %v760 = vunpack.c.h.b16 %v235
    %v761 = vunpack.c.l.b16 %v236
    %v762 = vunpack.c.h.b16 %v236
    %v763 = vunpack.c.l.b16 %v237
    %v764 = vunpack.c.h.b16 %v237
    %v765 = vunpack.c.l.b16 %v238
    %v766 = vunpack.c.h.b16 %v238
    %v767 = vunpack.c.l.b16 %v239
    %v768 = vunpack.c.h.b16 %v239
    %v769 = vunpack.c.l.b16 %v240
    %v770 = vunpack.c.h.b16 %v240
    %v771 = vunpack.c.l.b16 %v241
    %v772 = vunpack.c.h.b16 %v241
    %v773 = vunpack.c.l.b16 %v242
    %v774 = vunpack.c.h.b16 %v242
    %v775 = vunpack.c.l.b16 %v243
    %v776 = vunpack.c.h.b16 %v243
    %v777 = vunpack.c.l.b16 %v244
    %v778 = vunpack.c.h.b16 %v244
    %v779 = vunpack.c.l.b16 %v245
    %v780 = vunpack.c.h.b16 %v245
    %v781 = vunpack.c.l.b16 %v246
    %v782 = vunpack.c.h.b16 %v246
    %v783 = vunpack.c.l.b16 %v247
    %v784 = vunpack.c.h.b16 %v247
    %v785 = vunpack.c.l.b16 %v248
    %v786 = vunpack.c.h.b16 %v248
    %v787 = vunpack.c.l.b16 %v249
    %v788 = vunpack.c.h.b16 %v249
    %v789 = vunpack.c.l.b16 %v250
    %v790 = vunpack.c.h.b16 %v250
    %v791 = vunpack.c.l.b16 %v251
    %v792 = vunpack.c.h.b16 %v251
    %v793 = vunpack.c.l.b16 %v252
    %v794 = vunpack.c.h.b16 %v252
    %v795 = vunpack.c.l.b16 %v253
    %v796 = vunpack.c.h.b16 %v253
    %v797 = vunpack.c.l.b16 %v254
    %v798 = vunpack.c.h.b16 %v254
    %v799 = vunpack.c.l.b16 %v255
    %v800 = vunpack.c.h.b16 %v255
    %v801 = vunpack.c.l.b16 %v256
    %v802 = vunpack.c.h.b16 %v256
    %v803 = vunpack.c.l.b16 %v257
    %v804 = vunpack.c.h.b16 %v257
    %v805 = vunpack.c.l.b16 %v258
    %v806 = vunpack.c.h.b16 %v258
    %v807 = vunpack.c.l.b16 %v259
    %v808 = vunpack.c.h.b16 %v259
    %v809 = vunpack.c.l.b16 %v260
    %v810 = vunpack.c.h.b16 %v260
    %v811 = vunpack.c.l.b16 %v261
    %v812 = vunpack.c.h.b16 %v261
    %v813 = vunpack.c.l.b16 %v262
    %v814 = vunpack.c.h.b16 %v262
    %v815 = vunpack.c.l.b16 %v263
    %v816 = vunpack.c.h.b16 %v263
    %v817 = vunpack.c.l.b16 %v264
    %v818 = vunpack.c.h.b16 %v264
    %v819 = vunpack.c.l.b16 %v265
    %v820 = vunpack.c.h.b16 %v265
    %v821 = vunpack.c.l.b16 %v266
    %v822 = vunpack.c.h.b16 %v266
    %v823 = vunpack.c.l.b16 %v267
    %v824 = vunpack.c.h.b16 %v267
    %v825 = vunpack.c.l.b16 %v268
    %v826 = vunpack.c.h.b16 %v268
    %v827 = vunpack.c.l.b16 %v269
    %v828 = vunpack.c.h.b16 %v269
    %v829 = vunpack.c.l.b16 %v270
    %v830 = vunpack.c.h.b16 %v270
    %v831 = vunpack.c.l.b16 %v271
    %v832 = vunpack.c.h.b16 %v271
    %v833 = vunpack.c.l.b16 %v272
    %v834 = vunpack.c.h.b16 %v272
    %v835 = vunpack.c.l.b16 %v273
    %v836 = vunpack.c.h.b16 %v273
    %v837 = vunpack.c.l.b16 %v274
    %v838 = vunpack.c.h.b16 %v274
    %v839 = vunpack.c.l.b16 %v275
    %v840 = vunpack.c.h.b16 %v275
    %v841 = vunpack.c.l.b16 %v276
    %v842 = vunpack.c.h.b16 %v276
    %v843 = vunpack.c.l.b16 %v277
    %v844 = vunpack.c.h.b16 %v277
    %v845 = vunpack.c.l.b16 %v278
    %v846 = vunpack.c.h.b16 %v278
    %v847 = vunpack.c.l.b16 %v279
    %v848 = vunpack.c.h.b16 %v279
    %v849 = vunpack.c.l.b16 %v280
    %v850 = vunpack.c.h.b16 %v280
    %v851 = vunpack.c.l.b16 %v281
    %v852 = vunpack.c.h.b16 %v281
    %v853 = vunpack.c.l.b16 %v282
    %v854 = vunpack.c.h.b16 %v282
    %v855 = vunpack.c.l.b16 %v283
    %v856 = vunpack.c.h.b16 %v283
    %v857 = vunpack.c.l.b16 %v284
    %v858 = vunpack.c.h.b16 %v284
    %v859 = vunpack.c.l.b16 %v285
    %v860 = vunpack.c.h.b16 %v285
    %v861 = vunpack.c.l.b16 %v286
    %v862 = vunpack.c.h.b16 %v286
    %v863 = vunpack.c.l.b16 %v287
    %v864 = vunpack.c.h.b16 %v287
    %v865 = vunpack.c.l.b16 %v288
    %v866 = vunpack.c.h.b16 %v288
    %v867 = vunpack.c.l.b16 %v289
    %v868 = vunpack.c.h.b16 %v289
    %v869 = vunpack.c.l.b16 %v290
    %v870 = vunpack.c.h.b16 %v290
    %v871 = vunpack.c.l.b16 %v291
    %v872 = vunpack.c.h.b16 %v291
    %v873 = vunpack.c.l.b16 %v292
    %v874 = vunpack.c.h.b16 %v292
    %v875 = vunpack.c.l.b16 %v293
    %v876 = vunpack.c.h.b16 %v293
    %v877 = vunpack.c.l.b16 %v294
    %v878 = vunpack.c.h.b16 %v294
    %v879 = vunpack.c.l.b16 %v295
    %v880 = vunpack.c.h.b16 %v295
    %v881 = vunpack.c.l.b16 %v296
    %v882 = vunpack.c.h.b16 %v296
    %v883 = vunpack.c.l.b16 %v297
    %v884 = vunpack.c.h.b16 %v297
    %v885 = vunpack.c.l.b16 %v298
    %v886 = vunpack.c.h.b16 %v298
    %v887 = vunpack.c.l.b16 %v299
    %v888 = vunpack.c.h.b16 %v299
    %v889 = vunpack.c.l.b16 %v300
    %v890 = vunpack.c.h.b16 %v300
    %v891 = vunpack.c.l.b16 %v301
    %v892 = vunpack.c.h.b16 %v301
    %v893 = vunpack.c.l.b16 %v302
    %v894 = vunpack.c.h.b16 %v302
    %v895 = vunpack.c.l.b16 %v303
    %v896 = vunpack.c.h.b16 %v303
    %v897 = vunpack.c.l.b16 %v304
    %v898 = vunpack.c.h.b16 %v304
    %v899 = vunpack.c.l.b16 %v305
    %v900 = vunpack.c.h.b16 %v305
    %v901 = vunpack.c.l.b16 %v306
    %v902 = vunpack.c.h.b16 %v306
    %v903 = vunpack.c.l.b16 %v307
    %v904 = vunpack.c.h.b16 %v307
    %v905 = vunpack.c.l.b16 %v308
    %v906 = vunpack.c.h.b16 %v308
    %v907 = vpack.c.b16 %v519, %v515
    %v908 = vpack.c.b16 %v520, %v516
    %v909 = vpack.c.b16 %v521, %v517
    %v910 = vpack.c.b16 %v522, %v518
    %v911 = vpack.c.b16 %v527, %v523
    %v912 = vpack.c.b16 %v528, %v524
    %v913 = vpack.c.b16 %v529, %v525
    %v914 = vpack.c.b16 %v530, %v526
    %v915 = vpack.c.b16 %v535, %v531
    %v916 = vpack.c.b16 %v536, %v532
    %v917 = vpack.c.b16 %v537, %v533
    %v918 = vpack.c.b16 %v538, %v534
    %v919 = vpack.c.b16 %v543, %v539
    %v920 = vpack.c.b16 %v544, %v540
    %v921 = vpack.c.b16 %v545, %v541
    %v922 = vpack.c.b16 %v546, %v542
    %v923 = vpack.c.b16 %v551, %v547
    %v924 = vpack.c.b16 %v552, %v548
    %v925 = vpack.c.b16 %v553, %v549
    %v926 = vpack.c.b16 %v554, %v550
    %v927 = vpack.c.b16 %v559, %v555
    %v928 = vpack.c.b16 %v560, %v556
    %v929 = vpack.c.b16 %v561, %v557
    %v930 = vpack.c.b16 %v562, %v558
    %v931 = vpack.c.b16 %v567, %v563
    %v932 = vpack.c.b16 %v568, %v564
    %v933 = vpack.c.b16 %v569, %v565
    %v934 = vpack.c.b16 %v570, %v566
    %v935 = vpack.c.b16 %v575, %v571
    %v936 = vpack.c.b16 %v576, %v572
    %v937 = vpack.c.b16 %v577, %v573
    %v938 = vpack.c.b16 %v578, %v574
    %v939 = vpack.c.b16 %v583, %v579
    %v940 = vpack.c.b16 %v584, %v580
    %v941 = vpack.c.b16 %v585, %v581
    %v942 = vpack.c.b16 %v586, %v582
    %v943 = vpack.c.b16 %v591, %v587
    %v944 = vpack.c.b16 %v592, %v588
    %v945 = vpack.c.b16 %v593, %v589
    %v946 = vpack.c.b16 %v594, %v590
    %v947 = vpack.c.b16 %v599, %v595
    %v948 = vpack.c.b16 %v600, %v596
    %v949 = vpack.c.b16 %v601, %v597
    %v950 = vpack.c.b16 %v602, %v598
    %v951 = vpack.c.b16 %v607, %v603
    %v952 = vpack.c.b16 %v608, %v604
    %v953 = vpack.c.b16 %v609, %v605
    %v954 = vpack.c.b16 %v610, %v606
    %v955 = vpack.c.b16 %v615, %v611
    %v956 = vpack.c.b16 %v616, %v612
    %v957 = vpack.c.b16 %v617, %v613
    %v958 = vpack.c.b16 %v618, %v614
    %v959 = vpack.c.b16 %v623, %v619
    %v960 = vpack.c.b16 %v624, %v620
    %v961 = vpack.c.b16 %v625, %v621
    %v962 = vpack.c.b16 %v626, %v622
    %v963 = vpack.c.b16 %v631, %v627
    %v964 = vpack.c.b16 %v632, %v628
    %v965 = vpack.c.b16 %v633, %v629
    %v966 = vpack.c.b16 %v634, %v630
    %v967 = vpack.c.b16 %v639, %v635
    %v968 = vpack.c.b16 %v640, %v636
    %v969 = vpack.c.b16 %v641, %v637
    %v970 = vpack.c.b16 %v642, %v638
    %v971 = vpack.c.b16 %v647, %v643
    %v972 = vpack.c.b16 %v648, %v644
    %v973 = vpack.c.b16 %v649, %v645
    %v974 = vpack.c.b16 %v650, %v646
    %v975 = vpack.c.b16 %v655, %v651
    %v976 = vpack.c.b16 %v656, %v652
    %v977 = vpack.c.b16 %v657, %v653
    %v978 = vpack.c.b16 %v658, %v654
    %v979 = vpack.c.b16 %v663, %v659
    %v980 = vpack.c.b16 %v664, %v660
    %v981 = vpack.c.b16 %v665, %v661
    %v982 = vpack.c.b16 %v666, %v662
    %v983 = vpack.c.b16 %v671, %v667
    %v984 = vpack.c.b16 %v672, %v668
    %v985 = vpack.c.b16 %v673, %v669
    %v986 = vpack.c.b16 %v674, %v670
    %v987 = vpack.c.b16 %v679, %v675
    %v988 = vpack.c.b16 %v680, %v676
    %v989 = vpack.c.b16 %v681, %v677
    %v990 = vpack.c.b16 %v682, %v678
    %v991 = vpack.c.b16 %v687, %v683
    %v992 = vpack.c.b16 %v688, %v684
    %v993 = vpack.c.b16 %v689, %v685
    %v994 = vpack.c.b16 %v690, %v686
    %v995 = vpack.c.b16 %v695, %v691
    %v996 = vpack.c.b16 %v696, %v692
    %v997 = vpack.c.b16 %v697, %v693
    %v998 = vpack.c.b16 %v698, %v694
    %v999 = vpack.c.b16 %v703, %v699
    %v1000 = vpack.c.b16 %v704, %v700
    %v1001 = vpack.c.b16 %v705, %v701
    %v1002 = vpack.c.b16 %v706, %v702
    %v1003 = vpack.c.b16 %v711, %v707
    %v1004 = vpack.c.b16 %v712, %v708
    %v1005 = vpack.c.b16 %v713, %v709
    %v1006 = vpack.c.b16 %v714, %v710
    %v1007 = vpack.c.b16 %v719, %v715
    %v1008 = vpack.c.b16 %v720, %v716
    %v1009 = vpack.c.b16 %v721, %v717
    %v1010 = vpack.c.b16 %v722, %v718
    %v1011 = vpack.c.b16 %v727, %v723
    %v1012 = vpack.c.b16 %v728, %v724
    %v1013 = vpack.c.b16 %v729, %v725
    %v1014 = vpack.c.b16 %v730, %v726
    %v1015 = vpack.c.b16 %v735, %v731
    %v1016 = vpack.c.b16 %v736, %v732
    %v1017 = vpack.c.b16 %v737, %v733
    %v1018 = vpack.c.b16 %v738, %v734
    %v1019 = vpack.c.b16 %v743, %v739
    %v1020 = vpack.c.b16 %v744, %v740
    %v1021 = vpack.c.b16 %v745, %v741
    %v1022 = vpack.c.b16 %v746, %v742
    %v1023 = vpack.c.b16 %v751, %v747
    %v1024 = vpack.c.b16 %v752, %v748
    %v1025 = vpack.c.b16 %v753, %v749
    %v1026 = vpack.c.b16 %v754, %v750
    %v1027 = vpack.c.b16 %v759, %v755
    %v1028 = vpack.c.b16 %v760, %v756
    %v1029 = vpack.c.b16 %v761, %v757
    %v1030 = vpack.c.b16 %v762, %v758
    %v1031 = vpack.c.b16 %v767, %v763
    %v1032 = vpack.c.b16 %v768, %v764
    %v1033 = vpack.c.b16 %v769, %v765
    %v1034 = vpack.c.b16 %v770, %v766
    %v1035 = vpack.c.b16 %v775, %v771
    %v1036 = vpack.c.b16 %v776, %v772
    %v1037 = vpack.c.b16 %v777, %v773
    %v1038 = vpack.c.b16 %v778, %v774
    %v1039 = vpack.c.b16 %v783, %v779
    %v1040 = vpack.c.b16 %v784, %v780
    %v1041 = vpack.c.b16 %v785, %v781
    %v1042 = vpack.c.b16 %v786, %v782
    %v1043 = vpack.c.b16 %v791, %v787
    %v1044 = vpack.c.b16 %v792, %v788
    %v1045 = vpack.c.b16 %v793, %v789
    %v1046 = vpack.c.b16 %v794, %v790
    %v1047 = vpack.c.b16 %v799, %v795
    %v1048 = vpack.c.b16 %v800, %v796
    %v1049 = vpack.c.b16 %v801, %v797
    %v1050 = vpack.c.b16 %v802, %v798
    %v1051 = vpack.c.b16 %v807, %v803
    %v1052 = vpack.c.b16 %v808, %v804
    %v1053 = vpack.c.b16 %v809, %v805
    %v1054 = vpack.c.b16 %v810, %v806
    %v1055 = vpack.c.b16 %v815, %v811
    %v1056 = vpack.c.b16 %v816, %v812
    %v1057 = vpack.c.b16 %v817, %v813
    %v1058 = vpack.c.b16 %v818, %v814
    %v1059 = vpack.c.b16 %v823, %v819
    %v1060 = vpack.c.b16 %v824, %v820
    %v1061 = vpack.c.b16 %v825, %v821
    %v1062 = vpack.c.b16 %v826, %v822
    %v1063 = vpack.c.b16 %v831, %v827
    %v1064 = vpack.c.b16 %v832, %v828
    %v1065 = vpack.c.b16 %v833, %v829
    %v1066 = vpack.c.b16 %v834, %v830
    %v1067 = vpack.c.b16 %v839, %v835
    %v1068 = vpack.c.b16 %v840, %v836
    %v1069 = vpack.c.b16 %v841, %v837
    %v1070 = vpack.c.b16 %v842, %v838
    %v1071 = vpack.c.b16 %v847, %v843
    %v1072 = vpack.c.b16 %v848, %v844
    %v1073 = vpack.c.b16 %v849, %v845
    %v1074 = vpack.c.b16 %v850, %v846
    %v1075 = vpack.c.b16 %v855, %v851
    %v1076 = vpack.c.b16 %v856, %v852
    %v1077 = vpack.c.b16 %v857, %v853
    %v1078 = vpack.c.b16 %v858, %v854
    %v1079 = vpack.c.b16 %v863, %v859
    %v1080 = vpack.c.b16 %v864, %v860
    %v1081 = vpack.c.b16 %v865, %v861
    %v1082 = vpack.c.b16 %v866, %v862
    %v1083 = vpack.c.b16 %v871, %v867
    %v1084 = vpack.c.b16 %v872, %v868
    %v1085 = vpack.c.b16 %v873, %v869
    %v1086 = vpack.c.b16 %v874, %v870
    %v1087 = vpack.c.b16 %v879, %v875
    %v1088 = vpack.c.b16 %v880, %v876
    %v1089 = vpack.c.b16 %v881, %v877
    %v1090 = vpack.c.b16 %v882, %v878
    %v1091 = vpack.c.b16 %v887, %v883
    %v1092 = vpack.c.b16 %v888, %v884
    %v1093 = vpack.c.b16 %v889, %v885
    %v1094 = vpack.c.b16 %v890, %v886
    %v1095 = vpack.c.b16 %v895, %v891
    %v1096 = vpack.c.b16 %v896, %v892
    %v1097 = vpack.c.b16 %v897, %v893
    %v1098 = vpack.c.b16 %v898, %v894
    %v1099 = vpack.c.b16 %v903, %v899
    %v1100 = vpack.c.b16 %v904, %v900
    %v1101 = vpack.c.b16 %v905, %v901
    %v1102 = vpack.c.b16 %v906, %v902
    %vm1299 = vcmask 130048
    %v1301 = vsel %vm1299, %v112, 0
    %1303 = vmatpush.bf16.msra.mxu0 %v935
    %1304 = vmatpush.bf16.msra.mxu0 %v931
    %1305 = vmatpush.bf16.msra.mxu0 %v927
    %1306 = vmatpush.bf16.msra.mxu0 %v923
    %1307 = vmatpush.bf16.msra.mxu0 %v919
    %1308 = vmatpush.bf16.msra.mxu0 %v915
    %1309 = vmatpush.bf16.msra.mxu0 %v911
    %1310 = vmatpush.bf16.msra.mxu0 %v907
    %1311 = vmatmul.bf16.gmra.mxu0 %v106
    %v1312 = vpop.f32.mrf.mxu0
    %v1313 = vadd.f32 %v311, %v1312
    %v1314 = vpop.f32.mrf.mxu0
    %1315 = vdwg.mxu0
    %1316 = vmatpush.bf16.msra.mxu0 %v967
    %1317 = vmatpush.bf16.msra.mxu0 %v963
    %1318 = vmatpush.bf16.msra.mxu0 %v959
    %1319 = vmatpush.bf16.msra.mxu0 %v955
    %1320 = vmatpush.bf16.msra.mxu0 %v951
    %1321 = vmatpush.bf16.msra.mxu0 %v947
    %1322 = vmatpush.bf16.msra.mxu0 %v943
    %1323 = vmatpush.bf16.msra.mxu0 %v939
    %1324 = vmatmul.bf16.gmra.mxu0 %v107
    %v1325 = vpop.f32.mrf.mxu0
    %v1326 = vadd.f32 %v1313, %v1325
    %v1327 = vpop.f32.mrf.mxu0
    %1328 = vdwg.mxu0
    %1329 = vmatpush.bf16.msra.mxu0 %v999
    %1330 = vmatpush.bf16.msra.mxu0 %v995
    %1331 = vmatpush.bf16.msra.mxu0 %v991
    %1332 = vmatpush.bf16.msra.mxu0 %v987
    %1333 = vmatpush.bf16.msra.mxu0 %v983
    %1334 = vmatpush.bf16.msra.mxu0 %v979
    %1335 = vmatpush.bf16.msra.mxu0 %v975
    %1336 = vmatpush.bf16.msra.mxu0 %v971
    %1337 = vmatmul.bf16.gmra.mxu0 %v108
    %v1338 = vpop.f32.mrf.mxu0
    %v1339 = vadd.f32 %v1326, %v1338
    %v1340 = vpop.f32.mrf.mxu0
    %1341 = vdwg.mxu0
    %1342 = vmatpush.bf16.msra.mxu0 %v1031
    %1343 = vmatpush.bf16.msra.mxu0 %v1027
    %1344 = vmatpush.bf16.msra.mxu0 %v1023
    %1345 = vmatpush.bf16.msra.mxu0 %v1019
    %1346 = vmatpush.bf16.msra.mxu0 %v1015
    %1347 = vmatpush.bf16.msra.mxu0 %v1011
    %1348 = vmatpush.bf16.msra.mxu0 %v1007
    %1349 = vmatpush.bf16.msra.mxu0 %v1003
    %1350 = vmatmul.bf16.gmra.mxu0 %v109
    %v1351 = vpop.f32.mrf.mxu0
    %v1352 = vadd.f32 %v1339, %v1351
    %v1353 = vpop.f32.mrf.mxu0
    %1354 = vdwg.mxu0
    %1355 = vmatpush.bf16.msra.mxu0 %v1063
    %1356 = vmatpush.bf16.msra.mxu0 %v1059
    %1357 = vmatpush.bf16.msra.mxu0 %v1055
    %1358 = vmatpush.bf16.msra.mxu0 %v1051
    %1359 = vmatpush.bf16.msra.mxu0 %v1047
    %1360 = vmatpush.bf16.msra.mxu0 %v1043
    %1361 = vmatpush.bf16.msra.mxu0 %v1039
    %1362 = vmatpush.bf16.msra.mxu0 %v1035
    %1363 = vmatmul.bf16.gmra.mxu0 %v110
    %v1364 = vpop.f32.mrf.mxu0
    %v1365 = vadd.f32 %v1352, %v1364
    %v1366 = vpop.f32.mrf.mxu0
    %1367 = vdwg.mxu0
    %1368 = vmatpush.bf16.msra.mxu0 %v1095
    %1369 = vmatpush.bf16.msra.mxu0 %v1091
    %1370 = vmatpush.bf16.msra.mxu0 %v1087
    %1371 = vmatpush.bf16.msra.mxu0 %v1083
    %1372 = vmatpush.bf16.msra.mxu0 %v1079
    %1373 = vmatpush.bf16.msra.mxu0 %v1075
    %1374 = vmatpush.bf16.msra.mxu0 %v1071
    %1375 = vmatpush.bf16.msra.mxu0 %v1067
    %1376 = vmatmul.bf16.gmra.mxu0 %v111
    %v1377 = vpop.f32.mrf.mxu0
    %v1378 = vadd.f32 %v1365, %v1377
    %v1379 = vpop.f32.mrf.mxu0
    %1380 = vdwg.mxu0
    %1381 = vmatpush.bf16.msra.mxu0 0
    %1382 = vmatpush.bf16.msra.mxu0 0
    %1383 = vmatpush.bf16.msra.mxu0 0
    %1384 = vmatpush.bf16.msra.mxu0 0
    %1385 = vmatpush.bf16.msra.mxu0 0
    %1386 = vmatpush.bf16.msra.mxu0 0
    %1387 = vmatpush.bf16.msra.mxu0 0
    %1388 = vmatpush.bf16.msra.mxu0 %v1099
    %1389 = vmatmul.bf16.gmra.mxu0 %v1301
    %v1390 = vpop.f32.mrf.mxu0
    %v1391 = vadd.f32 %v1378, %v1390
    %v1392 = vpop.f32.mrf.mxu0
    %1393 = vdwg.mxu0
    %1394 = vmatpush.bf16.msra.mxu0 %v936
    %1395 = vmatpush.bf16.msra.mxu0 %v932
    %1396 = vmatpush.bf16.msra.mxu0 %v928
    %1397 = vmatpush.bf16.msra.mxu0 %v924
    %1398 = vmatpush.bf16.msra.mxu0 %v920
    %1399 = vmatpush.bf16.msra.mxu0 %v916
    %1400 = vmatpush.bf16.msra.mxu0 %v912
    %1401 = vmatpush.bf16.msra.mxu0 %v908
    %1402 = vmatmul.bf16.gmra.mxu0 %v106
    %v1403 = vpop.f32.mrf.mxu0
    %v1404 = vadd.f32 %v312, %v1403
    %v1405 = vpop.f32.mrf.mxu0
    %1406 = vdwg.mxu0
    %1407 = vmatpush.bf16.msra.mxu0 %v968
    %1408 = vmatpush.bf16.msra.mxu0 %v964
    %1409 = vmatpush.bf16.msra.mxu0 %v960
    %1410 = vmatpush.bf16.msra.mxu0 %v956
    %1411 = vmatpush.bf16.msra.mxu0 %v952
    %1412 = vmatpush.bf16.msra.mxu0 %v948
    %1413 = vmatpush.bf16.msra.mxu0 %v944
    %1414 = vmatpush.bf16.msra.mxu0 %v940
    %1415 = vmatmul.bf16.gmra.mxu0 %v107
    %v1416 = vpop.f32.mrf.mxu0
    %v1417 = vadd.f32 %v1404, %v1416
    %v1418 = vpop.f32.mrf.mxu0
    %1419 = vdwg.mxu0
    %1420 = vmatpush.bf16.msra.mxu0 %v1000
    %1421 = vmatpush.bf16.msra.mxu0 %v996
    %1422 = vmatpush.bf16.msra.mxu0 %v992
    %1423 = vmatpush.bf16.msra.mxu0 %v988
    %1424 = vmatpush.bf16.msra.mxu0 %v984
    %1425 = vmatpush.bf16.msra.mxu0 %v980
    %1426 = vmatpush.bf16.msra.mxu0 %v976
    %1427 = vmatpush.bf16.msra.mxu0 %v972
    %1428 = vmatmul.bf16.gmra.mxu0 %v108
    %v1429 = vpop.f32.mrf.mxu0
    %v1430 = vadd.f32 %v1417, %v1429
    %v1431 = vpop.f32.mrf.mxu0
    %1432 = vdwg.mxu0
    %1433 = vmatpush.bf16.msra.mxu0 %v1032
    %1434 = vmatpush.bf16.msra.mxu0 %v1028
    %1435 = vmatpush.bf16.msra.mxu0 %v1024
    %1436 = vmatpush.bf16.msra.mxu0 %v1020
    %1437 = vmatpush.bf16.msra.mxu0 %v1016
    %1438 = vmatpush.bf16.msra.mxu0 %v1012
    %1439 = vmatpush.bf16.msra.mxu0 %v1008
    %1440 = vmatpush.bf16.msra.mxu0 %v1004
    %1441 = vmatmul.bf16.gmra.mxu0 %v109
    %v1442 = vpop.f32.mrf.mxu0
    %v1443 = vadd.f32 %v1430, %v1442
    %v1444 = vpop.f32.mrf.mxu0
    %1445 = vdwg.mxu0
    %1446 = vmatpush.bf16.msra.mxu0 %v1064
    %1447 = vmatpush.bf16.msra.mxu0 %v1060
    %1448 = vmatpush.bf16.msra.mxu0 %v1056
    %1449 = vmatpush.bf16.msra.mxu0 %v1052
    %1450 = vmatpush.bf16.msra.mxu0 %v1048
    %1451 = vmatpush.bf16.msra.mxu0 %v1044
    %1452 = vmatpush.bf16.msra.mxu0 %v1040
    %1453 = vmatpush.bf16.msra.mxu0 %v1036
    %1454 = vmatmul.bf16.gmra.mxu0 %v110
    %v1455 = vpop.f32.mrf.mxu0
    %v1456 = vadd.f32 %v1443, %v1455
    %v1457 = vpop.f32.mrf.mxu0
    %1458 = vdwg.mxu0
    %1459 = vmatpush.bf16.msra.mxu0 %v1096
    %1460 = vmatpush.bf16.msra.mxu0 %v1092
    %1461 = vmatpush.bf16.msra.mxu0 %v1088
    %1462 = vmatpush.bf16.msra.mxu0 %v1084
    %1463 = vmatpush.bf16.msra.mxu0 %v1080
    %1464 = vmatpush.bf16.msra.mxu0 %v1076
    %1465 = vmatpush.bf16.msra.mxu0 %v1072
    %1466 = vmatpush.bf16.msra.mxu0 %v1068
    %1467 = vmatmul.bf16.gmra.mxu0 %v111
    %v1468 = vpop.f32.mrf.mxu0
    %v1469 = vadd.f32 %v1456, %v1468
    %v1470 = vpop.f32.mrf.mxu0
    %1471 = vdwg.mxu0
    %1472 = vmatpush.bf16.msra.mxu0 0
    %1473 = vmatpush.bf16.msra.mxu0 0
    %1474 = vmatpush.bf16.msra.mxu0 0
    %1475 = vmatpush.bf16.msra.mxu0 0
    %1476 = vmatpush.bf16.msra.mxu0 0
    %1477 = vmatpush.bf16.msra.mxu0 0
    %1478 = vmatpush.bf16.msra.mxu0 0
    %1479 = vmatpush.bf16.msra.mxu0 %v1100
    %1480 = vmatmul.bf16.gmra.mxu0 %v1301
    %v1481 = vpop.f32.mrf.mxu0
    %v1482 = vadd.f32 %v1469, %v1481
    %v1483 = vpop.f32.mrf.mxu0
    %1484 = vdwg.mxu0
    %1485 = vmatpush.bf16.msra.mxu0 %v937
    %1486 = vmatpush.bf16.msra.mxu0 %v933
    %1487 = vmatpush.bf16.msra.mxu0 %v929
    %1488 = vmatpush.bf16.msra.mxu0 %v925
    %1489 = vmatpush.bf16.msra.mxu0 %v921
    %1490 = vmatpush.bf16.msra.mxu0 %v917
    %1491 = vmatpush.bf16.msra.mxu0 %v913
    %1492 = vmatpush.bf16.msra.mxu0 %v909
    %1493 = vmatmul.bf16.gmra.mxu0 %v106
    %v1494 = vpop.f32.mrf.mxu0
    %v1495 = vadd.f32 %v313, %v1494
    %v1496 = vpop.f32.mrf.mxu0
    %1497 = vdwg.mxu0
    %1498 = vmatpush.bf16.msra.mxu0 %v969
    %1499 = vmatpush.bf16.msra.mxu0 %v965
    %1500 = vmatpush.bf16.msra.mxu0 %v961
    %1501 = vmatpush.bf16.msra.mxu0 %v957
    %1502 = vmatpush.bf16.msra.mxu0 %v953
    %1503 = vmatpush.bf16.msra.mxu0 %v949
    %1504 = vmatpush.bf16.msra.mxu0 %v945
    %1505 = vmatpush.bf16.msra.mxu0 %v941
    %1506 = vmatmul.bf16.gmra.mxu0 %v107
    %v1507 = vpop.f32.mrf.mxu0
    %v1508 = vadd.f32 %v1495, %v1507
    %v1509 = vpop.f32.mrf.mxu0
    %1510 = vdwg.mxu0
    %1511 = vmatpush.bf16.msra.mxu0 %v1001
    %1512 = vmatpush.bf16.msra.mxu0 %v997
    %1513 = vmatpush.bf16.msra.mxu0 %v993
    %1514 = vmatpush.bf16.msra.mxu0 %v989
    %1515 = vmatpush.bf16.msra.mxu0 %v985
    %1516 = vmatpush.bf16.msra.mxu0 %v981
    %1517 = vmatpush.bf16.msra.mxu0 %v977
    %1518 = vmatpush.bf16.msra.mxu0 %v973
    %1519 = vmatmul.bf16.gmra.mxu0 %v108
    %v1520 = vpop.f32.mrf.mxu0
    %v1521 = vadd.f32 %v1508, %v1520
    %v1522 = vpop.f32.mrf.mxu0
    %1523 = vdwg.mxu0
    %1524 = vmatpush.bf16.msra.mxu0 %v1033
    %1525 = vmatpush.bf16.msra.mxu0 %v1029
    %1526 = vmatpush.bf16.msra.mxu0 %v1025
    %1527 = vmatpush.bf16.msra.mxu0 %v1021
    %1528 = vmatpush.bf16.msra.mxu0 %v1017
    %1529 = vmatpush.bf16.msra.mxu0 %v1013
    %1530 = vmatpush.bf16.msra.mxu0 %v1009
    %1531 = vmatpush.bf16.msra.mxu0 %v1005
    %1532 = vmatmul.bf16.gmra.mxu0 %v109
    %v1533 = vpop.f32.mrf.mxu0
    %v1534 = vadd.f32 %v1521, %v1533
    %v1535 = vpop.f32.mrf.mxu0
    %1536 = vdwg.mxu0
    %1537 = vmatpush.bf16.msra.mxu0 %v1065
    %1538 = vmatpush.bf16.msra.mxu0 %v1061
    %1539 = vmatpush.bf16.msra.mxu0 %v1057
    %1540 = vmatpush.bf16.msra.mxu0 %v1053
    %1541 = vmatpush.bf16.msra.mxu0 %v1049
    %1542 = vmatpush.bf16.msra.mxu0 %v1045
    %1543 = vmatpush.bf16.msra.mxu0 %v1041
    %1544 = vmatpush.bf16.msra.mxu0 %v1037
    %1545 = vmatmul.bf16.gmra.mxu0 %v110
    %v1546 = vpop.f32.mrf.mxu0
    %v1547 = vadd.f32 %v1534, %v1546
    %v1548 = vpop.f32.mrf.mxu0
    %1549 = vdwg.mxu0
    %1550 = vmatpush.bf16.msra.mxu0 %v1097
    %1551 = vmatpush.bf16.msra.mxu0 %v1093
    %1552 = vmatpush.bf16.msra.mxu0 %v1089
    %1553 = vmatpush.bf16.msra.mxu0 %v1085
    %1554 = vmatpush.bf16.msra.mxu0 %v1081
    %1555 = vmatpush.bf16.msra.mxu0 %v1077
    %1556 = vmatpush.bf16.msra.mxu0 %v1073
    %1557 = vmatpush.bf16.msra.mxu0 %v1069
    %1558 = vmatmul.bf16.gmra.mxu0 %v111
    %v1559 = vpop.f32.mrf.mxu0
    %v1560 = vadd.f32 %v1547, %v1559
    %v1561 = vpop.f32.mrf.mxu0
    %1562 = vdwg.mxu0
    %1563 = vmatpush.bf16.msra.mxu0 0
    %1564 = vmatpush.bf16.msra.mxu0 0
    %1565 = vmatpush.bf16.msra.mxu0 0
    %1566 = vmatpush.bf16.msra.mxu0 0
    %1567 = vmatpush.bf16.msra.mxu0 0
    %1568 = vmatpush.bf16.msra.mxu0 0
    %1569 = vmatpush.bf16.msra.mxu0 0
    %1570 = vmatpush.bf16.msra.mxu0 %v1101
    %1571 = vmatmul.bf16.gmra.mxu0 %v1301
    %v1572 = vpop.f32.mrf.mxu0
    %v1573 = vadd.f32 %v1560, %v1572
    %v1574 = vpop.f32.mrf.mxu0
    %1575 = vdwg.mxu0
    %1576 = vmatpush.bf16.msra.mxu0 %v938
    %1577 = vmatpush.bf16.msra.mxu0 %v934
    %1578 = vmatpush.bf16.msra.mxu0 %v930
    %1579 = vmatpush.bf16.msra.mxu0 %v926
    %1580 = vmatpush.bf16.msra.mxu0 %v922
    %1581 = vmatpush.bf16.msra.mxu0 %v918
    %1582 = vmatpush.bf16.msra.mxu0 %v914
    %1583 = vmatpush.bf16.msra.mxu0 %v910
    %1584 = vmatmul.bf16.gmra.mxu0 %v106
    %v1585 = vpop.f32.mrf.mxu0
    %v1586 = vadd.f32 %v314, %v1585
    %v1587 = vpop.f32.mrf.mxu0
    %1588 = vdwg.mxu0
    %1589 = vmatpush.bf16.msra.mxu0 %v970
    %1590 = vmatpush.bf16.msra.mxu0 %v966
    %1591 = vmatpush.bf16.msra.mxu0 %v962
    %1592 = vmatpush.bf16.msra.mxu0 %v958
    %1593 = vmatpush.bf16.msra.mxu0 %v954
    %1594 = vmatpush.bf16.msra.mxu0 %v950
    %1595 = vmatpush.bf16.msra.mxu0 %v946
    %1596 = vmatpush.bf16.msra.mxu0 %v942
    %1597 = vmatmul.bf16.gmra.mxu0 %v107
    %v1598 = vpop.f32.mrf.mxu0
    %v1599 = vadd.f32 %v1586, %v1598
    %v1600 = vpop.f32.mrf.mxu0
    %1601 = vdwg.mxu0
    %1602 = vmatpush.bf16.msra.mxu0 %v1002
    %1603 = vmatpush.bf16.msra.mxu0 %v998
    %1604 = vmatpush.bf16.msra.mxu0 %v994
    %1605 = vmatpush.bf16.msra.mxu0 %v990
    %1606 = vmatpush.bf16.msra.mxu0 %v986
    %1607 = vmatpush.bf16.msra.mxu0 %v982
    %1608 = vmatpush.bf16.msra.mxu0 %v978
    %1609 = vmatpush.bf16.msra.mxu0 %v974
    %1610 = vmatmul.bf16.gmra.mxu0 %v108
    %v1611 = vpop.f32.mrf.mxu0
    %v1612 = vadd.f32 %v1599, %v1611
    %v1613 = vpop.f32.mrf.mxu0
    %1614 = vdwg.mxu0
    %1615 = vmatpush.bf16.msra.mxu0 %v1034
    %1616 = vmatpush.bf16.msra.mxu0 %v1030
    %1617 = vmatpush.bf16.msra.mxu0 %v1026
    %1618 = vmatpush.bf16.msra.mxu0 %v1022
    %1619 = vmatpush.bf16.msra.mxu0 %v1018
    %1620 = vmatpush.bf16.msra.mxu0 %v1014
    %1621 = vmatpush.bf16.msra.mxu0 %v1010
    %1622 = vmatpush.bf16.msra.mxu0 %v1006
    %1623 = vmatmul.bf16.gmra.mxu0 %v109
    %v1624 = vpop.f32.mrf.mxu0
    %v1625 = vadd.f32 %v1612, %v1624
    %v1626 = vpop.f32.mrf.mxu0
    %1627 = vdwg.mxu0
    %1628 = vmatpush.bf16.msra.mxu0 %v1066
    %1629 = vmatpush.bf16.msra.mxu0 %v1062
    %1630 = vmatpush.bf16.msra.mxu0 %v1058
    %1631 = vmatpush.bf16.msra.mxu0 %v1054
    %1632 = vmatpush.bf16.msra.mxu0 %v1050
    %1633 = vmatpush.bf16.msra.mxu0 %v1046
    %1634 = vmatpush.bf16.msra.mxu0 %v1042
    %1635 = vmatpush.bf16.msra.mxu0 %v1038
    %1636 = vmatmul.bf16.gmra.mxu0 %v110
    %v1637 = vpop.f32.mrf.mxu0
    %v1638 = vadd.f32 %v1625, %v1637
    %v1639 = vpop.f32.mrf.mxu0
    %1640 = vdwg.mxu0
    %1641 = vmatpush.bf16.msra.mxu0 %v1098
    %1642 = vmatpush.bf16.msra.mxu0 %v1094
    %1643 = vmatpush.bf16.msra.mxu0 %v1090
    %1644 = vmatpush.bf16.msra.mxu0 %v1086
    %1645 = vmatpush.bf16.msra.mxu0 %v1082
    %1646 = vmatpush.bf16.msra.mxu0 %v1078
    %1647 = vmatpush.bf16.msra.mxu0 %v1074
    %1648 = vmatpush.bf16.msra.mxu0 %v1070
    %1649 = vmatmul.bf16.gmra.mxu0 %v111
    %v1650 = vpop.f32.mrf.mxu0
    %v1651 = vadd.f32 %v1638, %v1650
    %v1652 = vpop.f32.mrf.mxu0
    %1653 = vdwg.mxu0
    %1654 = vmatpush.bf16.msra.mxu0 0
    %1655 = vmatpush.bf16.msra.mxu0 0
    %1656 = vmatpush.bf16.msra.mxu0 0
    %1657 = vmatpush.bf16.msra.mxu0 0
    %1658 = vmatpush.bf16.msra.mxu0 0
    %1659 = vmatpush.bf16.msra.mxu0 0
    %1660 = vmatpush.bf16.msra.mxu0 0
    %1661 = vmatpush.bf16.msra.mxu0 %v1102
    %1662 = vmatmul.bf16.gmra.mxu0 %v1301
    %v1663 = vpop.f32.mrf.mxu0
    %v1664 = vadd.f32 %v1651, %v1663
    %v1665 = vpop.f32.mrf.mxu0
    %1666 = vdwg.mxu0
    %v1667 = vmul.f32 %v1391, 0.2
    %v1668 = vmul.f32 %v1482, 0.2
    %v1669 = vmul.f32 %v1573, 0.2
    %v1670 = vmul.f32 %v1664, 0.2
    %v1671 = vmax.f32 %v1391, %v1667
    %v1672 = vmax.f32 %v1482, %v1668
    %v1673 = vmax.f32 %v1573, %v1669
    %v1674 = vmax.f32 %v1664, %v1670
    %v1675 = vpack.c.bf16 %v1671, %v1671
    %v1676 = vpack.c.bf16 %v1672, %v1672
    %v1677 = vpack.c.bf16 %v1673, %v1673
    %v1678 = vpack.c.bf16 %v1674, %v1674
    %v1679 = vld [vmem:[#allocation5] sm:$0xff]
    %v1680 = vld [vmem:[#allocation5 + $0x8] sm:$0xff]
    %v1681 = vld [vmem:[#allocation5 + $0x10] sm:$0xff]
    %v1682 = vld [vmem:[#allocation5 + $0x18] sm:$0xff]
    %v1683 = vld [vmem:[#allocation5 + $0x20] sm:$0xff]
    %v1684 = vld [vmem:[#allocation5 + $0x28] sm:$0xff]
    %v1685 = vld [vmem:[#allocation5 + $0x30] sm:$0xff]
    %v1686 = vld [vmem:[#allocation5 + $0x38] sm:$0xff]
    %v1687 = vld [vmem:[#allocation5 + $0x40] sm:$0xff]
    %v1688 = vld [vmem:[#allocation5 + $0x48] sm:$0xff]
    %v1689 = vld [vmem:[#allocation5 + $0x50] sm:$0xff]
    %v1690 = vld [vmem:[#allocation5 + $0x58] sm:$0xff]
    %v1691 = vld [vmem:[#allocation5 + $0x60] sm:$0xff]
    %v1692 = vld [vmem:[#allocation5 + $0x68] sm:$0xff]
    %v1693 = vld [vmem:[#allocation5 + $0x70] sm:$0xff]
    %v1694 = vld [vmem:[#allocation5 + $0x78] sm:$0xff]
    %v1695 = vld [vmem:[#allocation5 + $0x80] sm:$0xff]
    %v1696 = vld [vmem:[#allocation5 + $0x88] sm:$0xff]
    %v1697 = vld [vmem:[#allocation5 + $0x90] sm:$0xff]
    %v1698 = vld [vmem:[#allocation5 + $0x98] sm:$0xff]
    %v1699 = vld [vmem:[#allocation5 + $0xa0] sm:$0xff]
    %v1700 = vld [vmem:[#allocation5 + $0xa8] sm:$0xff]
    %v1701 = vld [vmem:[#allocation5 + $0xb0] sm:$0xff]
    %v1702 = vld [vmem:[#allocation5 + $0xb8] sm:$0xff]
    %v1703 = vld [vmem:[#allocation5 + $0xc0] sm:$0xff]
    %v1704 = vld [vmem:[#allocation5 + $0xc8] sm:$0xff]
    %v1705 = vld [vmem:[#allocation5 + $0xd0] sm:$0xff]
    %v1706 = vld [vmem:[#allocation5 + $0xd8] sm:$0xff]
    %v1707 = vld [vmem:[#allocation5 + $0xe0] sm:$0xff]
    %v1708 = vld [vmem:[#allocation5 + $0xe8] sm:$0xff]
    %v1709 = vld [vmem:[#allocation5 + $0xf0] sm:$0xff]
    %v1710 = vld [vmem:[#allocation5 + $0xf8] sm:$0xff]
    %v1711 = vld [vmem:[#allocation5 + $0x100] sm:$0xff]
    %v1712 = vld [vmem:[#allocation5 + $0x108] sm:$0xff]
    %v1713 = vld [vmem:[#allocation5 + $0x110] sm:$0xff]
    %v1714 = vld [vmem:[#allocation5 + $0x118] sm:$0xff]
    %v1715 = vld [vmem:[#allocation5 + $0x120] sm:$0xff]
    %v1716 = vld [vmem:[#allocation5 + $0x128] sm:$0xff]
    %v1717 = vld [vmem:[#allocation5 + $0x130] sm:$0xff]
    %v1718 = vld [vmem:[#allocation5 + $0x138] sm:$0xff]
    %v1719 = vld [vmem:[#allocation5 + $0x140] sm:$0xff]
    %v1720 = vld [vmem:[#allocation5 + $0x148] sm:$0xff]
    %v1721 = vld [vmem:[#allocation5 + $0x150] sm:$0xff]
    %v1722 = vld [vmem:[#allocation5 + $0x158] sm:$0xff]
    %v1723 = vld [vmem:[#allocation5 + $0x160] sm:$0xff]
    %v1724 = vld [vmem:[#allocation5 + $0x168] sm:$0xff]
    %v1725 = vld [vmem:[#allocation5 + $0x170] sm:$0xff]
    %v1726 = vld [vmem:[#allocation5 + $0x178] sm:$0xff]
    %v1727 = vld [vmem:[#allocation5 + $0x180] sm:$0xff]
    %v1728 = vld [vmem:[#allocation5 + $0x188] sm:$0xff]
    %v1729 = vld [vmem:[#allocation5 + $0x190] sm:$0xff]
    %v1730 = vld [vmem:[#allocation5 + $0x198] sm:$0xff]
    %v1731 = vld [vmem:[#allocation5 + $0x1a0] sm:$0xff]
    %v1732 = vld [vmem:[#allocation5 + $0x1a8] sm:$0xff]
    %v1733 = vld [vmem:[#allocation5 + $0x1b0] sm:$0xff]
    %v1734 = vld [vmem:[#allocation5 + $0x1b8] sm:$0xff]
    %v1735 = vld [vmem:[#allocation5 + $0x1c0] sm:$0xff]
    %v1736 = vld [vmem:[#allocation5 + $0x1c8] sm:$0xff]
    %v1737 = vld [vmem:[#allocation5 + $0x1d0] sm:$0xff]
    %v1738 = vld [vmem:[#allocation5 + $0x1d8] sm:$0xff]
    %v1739 = vld [vmem:[#allocation5 + $0x1e0] sm:$0xff]
    %v1740 = vld [vmem:[#allocation5 + $0x1e8] sm:$0xff]
    %v1741 = vld [vmem:[#allocation5 + $0x1f0] sm:$0xff]
    %v1742 = vld [vmem:[#allocation5 + $0x1f8] sm:$0xff]
    %v1743 = vld [vmem:[%s4] sm:$0x3]
    %v1745 = vperm.slane %v1743, 0
    %v1746 = vperm.slane %v1743, 1
    %v1813 = vunpack.c.l.b16 %v1679
    %v1814 = vunpack.c.h.b16 %v1679
    %v1815 = vunpack.c.l.b16 %v1680
    %v1816 = vunpack.c.h.b16 %v1680
    %v1817 = vunpack.c.l.b16 %v1681
    %v1818 = vunpack.c.h.b16 %v1681
    %v1819 = vunpack.c.l.b16 %v1682
    %v1820 = vunpack.c.h.b16 %v1682
    %v1821 = vunpack.c.l.b16 %v1683
    %v1822 = vunpack.c.h.b16 %v1683
    %v1823 = vunpack.c.l.b16 %v1684
    %v1824 = vunpack.c.h.b16 %v1684
    %v1825 = vunpack.c.l.b16 %v1685
    %v1826 = vunpack.c.h.b16 %v1685
    %v1827 = vunpack.c.l.b16 %v1686
    %v1828 = vunpack.c.h.b16 %v1686
    %v1829 = vunpack.c.l.b16 %v1687
    %v1830 = vunpack.c.h.b16 %v1687
    %v1831 = vunpack.c.l.b16 %v1688
    %v1832 = vunpack.c.h.b16 %v1688
    %v1833 = vunpack.c.l.b16 %v1689
    %v1834 = vunpack.c.h.b16 %v1689
    %v1835 = vunpack.c.l.b16 %v1690
    %v1836 = vunpack.c.h.b16 %v1690
    %v1837 = vunpack.c.l.b16 %v1691
    %v1838 = vunpack.c.h.b16 %v1691
    %v1839 = vunpack.c.l.b16 %v1692
    %v1840 = vunpack.c.h.b16 %v1692
    %v1841 = vunpack.c.l.b16 %v1693
    %v1842 = vunpack.c.h.b16 %v1693
    %v1843 = vunpack.c.l.b16 %v1694
    %v1844 = vunpack.c.h.b16 %v1694
    %v1845 = vunpack.c.l.b16 %v1695
    %v1846 = vunpack.c.h.b16 %v1695
    %v1847 = vunpack.c.l.b16 %v1696
    %v1848 = vunpack.c.h.b16 %v1696
    %v1849 = vunpack.c.l.b16 %v1697
    %v1850 = vunpack.c.h.b16 %v1697
    %v1851 = vunpack.c.l.b16 %v1698
    %v1852 = vunpack.c.h.b16 %v1698
    %v1853 = vunpack.c.l.b16 %v1699
    %v1854 = vunpack.c.h.b16 %v1699
    %v1855 = vunpack.c.l.b16 %v1700
    %v1856 = vunpack.c.h.b16 %v1700
    %v1857 = vunpack.c.l.b16 %v1701
    %v1858 = vunpack.c.h.b16 %v1701
    %v1859 = vunpack.c.l.b16 %v1702
    %v1860 = vunpack.c.h.b16 %v1702
    %v1861 = vunpack.c.l.b16 %v1703
    %v1862 = vunpack.c.h.b16 %v1703
    %v1863 = vunpack.c.l.b16 %v1704
    %v1864 = vunpack.c.h.b16 %v1704
    %v1865 = vunpack.c.l.b16 %v1705
    %v1866 = vunpack.c.h.b16 %v1705
    %v1867 = vunpack.c.l.b16 %v1706
    %v1868 = vunpack.c.h.b16 %v1706
    %v1869 = vunpack.c.l.b16 %v1707
    %v1870 = vunpack.c.h.b16 %v1707
    %v1871 = vunpack.c.l.b16 %v1708
    %v1872 = vunpack.c.h.b16 %v1708
    %v1873 = vunpack.c.l.b16 %v1709
    %v1874 = vunpack.c.h.b16 %v1709
    %v1875 = vunpack.c.l.b16 %v1710
    %v1876 = vunpack.c.h.b16 %v1710
    %v1877 = vunpack.c.l.b16 %v1711
    %v1878 = vunpack.c.h.b16 %v1711
    %v1879 = vunpack.c.l.b16 %v1712
    %v1880 = vunpack.c.h.b16 %v1712
    %v1881 = vunpack.c.l.b16 %v1713
    %v1882 = vunpack.c.h.b16 %v1713
    %v1883 = vunpack.c.l.b16 %v1714
    %v1884 = vunpack.c.h.b16 %v1714
    %v1885 = vunpack.c.l.b16 %v1715
    %v1886 = vunpack.c.h.b16 %v1715
    %v1887 = vunpack.c.l.b16 %v1716
    %v1888 = vunpack.c.h.b16 %v1716
    %v1889 = vunpack.c.l.b16 %v1717
    %v1890 = vunpack.c.h.b16 %v1717
    %v1891 = vunpack.c.l.b16 %v1718
    %v1892 = vunpack.c.h.b16 %v1718
    %v1893 = vunpack.c.l.b16 %v1719
    %v1894 = vunpack.c.h.b16 %v1719
    %v1895 = vunpack.c.l.b16 %v1720
    %v1896 = vunpack.c.h.b16 %v1720
    %v1897 = vunpack.c.l.b16 %v1721
    %v1898 = vunpack.c.h.b16 %v1721
    %v1899 = vunpack.c.l.b16 %v1722
    %v1900 = vunpack.c.h.b16 %v1722
    %v1901 = vunpack.c.l.b16 %v1723
    %v1902 = vunpack.c.h.b16 %v1723
    %v1903 = vunpack.c.l.b16 %v1724
    %v1904 = vunpack.c.h.b16 %v1724
    %v1905 = vunpack.c.l.b16 %v1725
    %v1906 = vunpack.c.h.b16 %v1725
    %v1907 = vunpack.c.l.b16 %v1726
    %v1908 = vunpack.c.h.b16 %v1726
    %v1909 = vunpack.c.l.b16 %v1727
    %v1910 = vunpack.c.h.b16 %v1727
    %v1911 = vunpack.c.l.b16 %v1728
    %v1912 = vunpack.c.h.b16 %v1728
    %v1913 = vunpack.c.l.b16 %v1729
    %v1914 = vunpack.c.h.b16 %v1729
    %v1915 = vunpack.c.l.b16 %v1730
    %v1916 = vunpack.c.h.b16 %v1730
    %v1917 = vunpack.c.l.b16 %v1731
    %v1918 = vunpack.c.h.b16 %v1731
    %v1919 = vunpack.c.l.b16 %v1732
    %v1920 = vunpack.c.h.b16 %v1732
    %v1921 = vunpack.c.l.b16 %v1733
    %v1922 = vunpack.c.h.b16 %v1733
    %v1923 = vunpack.c.l.b16 %v1734
    %v1924 = vunpack.c.h.b16 %v1734
    %v1925 = vunpack.c.l.b16 %v1735
    %v1926 = vunpack.c.h.b16 %v1735
    %v1927 = vunpack.c.l.b16 %v1736
    %v1928 = vunpack.c.h.b16 %v1736
    %v1929 = vunpack.c.l.b16 %v1737
    %v1930 = vunpack.c.h.b16 %v1737
    %v1931 = vunpack.c.l.b16 %v1738
    %v1932 = vunpack.c.h.b16 %v1738
    %v1933 = vunpack.c.l.b16 %v1739
    %v1934 = vunpack.c.h.b16 %v1739
    %v1935 = vunpack.c.l.b16 %v1740
    %v1936 = vunpack.c.h.b16 %v1740
    %v1937 = vunpack.c.l.b16 %v1741
    %v1938 = vunpack.c.h.b16 %v1741
    %v1939 = vunpack.c.l.b16 %v1742
    %v1940 = vunpack.c.h.b16 %v1742
    %v1941 = vpack.c.b16 %v1815, %v1813
    %v1942 = vpack.c.b16 %v1816, %v1814
    %v1943 = vpack.c.b16 %v1819, %v1817
    %v1944 = vpack.c.b16 %v1820, %v1818
    %v1945 = vpack.c.b16 %v1823, %v1821
    %v1946 = vpack.c.b16 %v1824, %v1822
    %v1947 = vpack.c.b16 %v1827, %v1825
    %v1948 = vpack.c.b16 %v1828, %v1826
    %v1949 = vpack.c.b16 %v1831, %v1829
    %v1950 = vpack.c.b16 %v1832, %v1830
    %v1951 = vpack.c.b16 %v1835, %v1833
    %v1952 = vpack.c.b16 %v1836, %v1834
    %v1953 = vpack.c.b16 %v1839, %v1837
    %v1954 = vpack.c.b16 %v1840, %v1838
    %v1955 = vpack.c.b16 %v1843, %v1841
    %v1956 = vpack.c.b16 %v1844, %v1842
    %v1957 = vpack.c.b16 %v1847, %v1845
    %v1958 = vpack.c.b16 %v1848, %v1846
    %v1959 = vpack.c.b16 %v1851, %v1849
    %v1960 = vpack.c.b16 %v1852, %v1850
    %v1961 = vpack.c.b16 %v1855, %v1853
    %v1962 = vpack.c.b16 %v1856, %v1854
    %v1963 = vpack.c.b16 %v1859, %v1857
    %v1964 = vpack.c.b16 %v1860, %v1858
    %v1965 = vpack.c.b16 %v1863, %v1861
    %v1966 = vpack.c.b16 %v1864, %v1862
    %v1967 = vpack.c.b16 %v1867, %v1865
    %v1968 = vpack.c.b16 %v1868, %v1866
    %v1969 = vpack.c.b16 %v1871, %v1869
    %v1970 = vpack.c.b16 %v1872, %v1870
    %v1971 = vpack.c.b16 %v1875, %v1873
    %v1972 = vpack.c.b16 %v1876, %v1874
    %v1973 = vpack.c.b16 %v1879, %v1877
    %v1974 = vpack.c.b16 %v1880, %v1878
    %v1975 = vpack.c.b16 %v1883, %v1881
    %v1976 = vpack.c.b16 %v1884, %v1882
    %v1977 = vpack.c.b16 %v1887, %v1885
    %v1978 = vpack.c.b16 %v1888, %v1886
    %v1979 = vpack.c.b16 %v1891, %v1889
    %v1980 = vpack.c.b16 %v1892, %v1890
    %v1981 = vpack.c.b16 %v1895, %v1893
    %v1982 = vpack.c.b16 %v1896, %v1894
    %v1983 = vpack.c.b16 %v1899, %v1897
    %v1984 = vpack.c.b16 %v1900, %v1898
    %v1985 = vpack.c.b16 %v1903, %v1901
    %v1986 = vpack.c.b16 %v1904, %v1902
    %v1987 = vpack.c.b16 %v1907, %v1905
    %v1988 = vpack.c.b16 %v1908, %v1906
    %v1989 = vpack.c.b16 %v1911, %v1909
    %v1990 = vpack.c.b16 %v1912, %v1910
    %v1991 = vpack.c.b16 %v1915, %v1913
    %v1992 = vpack.c.b16 %v1916, %v1914
    %v1993 = vpack.c.b16 %v1919, %v1917
    %v1994 = vpack.c.b16 %v1920, %v1918
    %v1995 = vpack.c.b16 %v1923, %v1921
    %v1996 = vpack.c.b16 %v1924, %v1922
    %v1997 = vpack.c.b16 %v1927, %v1925
    %v1998 = vpack.c.b16 %v1928, %v1926
    %v1999 = vpack.c.b16 %v1931, %v1929
    %v2000 = vpack.c.b16 %v1932, %v1930
    %v2001 = vpack.c.b16 %v1935, %v1933
    %v2002 = vpack.c.b16 %v1936, %v1934
    %v2003 = vpack.c.b16 %v1939, %v1937
    %v2004 = vpack.c.b16 %v1940, %v1938
    %2069 = vmatpush.bf16.msra.mxu0 %v1955
    %2070 = vmatpush.bf16.msra.mxu0 %v1953
    %2071 = vmatpush.bf16.msra.mxu0 %v1951
    %2072 = vmatpush.bf16.msra.mxu0 %v1949
    %2073 = vmatpush.bf16.msra.mxu0 %v1947
    %2074 = vmatpush.bf16.msra.mxu0 %v1945
    %2075 = vmatpush.bf16.msra.mxu0 %v1943
    %2076 = vmatpush.bf16.msra.mxu0 %v1941
    %2077 = vmatmul.bf16.gmra.mxu0 %v1675
    %v2078 = vpop.f32.mrf.mxu0
    %v2079 = vadd.f32 %v1745, %v2078
    %v2080 = vpop.f32.mrf.mxu0
    %2081 = vdwg.mxu0
    %2082 = vmatpush.bf16.msra.mxu0 %v1971
    %2083 = vmatpush.bf16.msra.mxu0 %v1969
    %2084 = vmatpush.bf16.msra.mxu0 %v1967
    %2085 = vmatpush.bf16.msra.mxu0 %v1965
    %2086 = vmatpush.bf16.msra.mxu0 %v1963
    %2087 = vmatpush.bf16.msra.mxu0 %v1961
    %2088 = vmatpush.bf16.msra.mxu0 %v1959
    %2089 = vmatpush.bf16.msra.mxu0 %v1957
    %2090 = vmatmul.bf16.gmra.mxu0 %v1676
    %v2091 = vpop.f32.mrf.mxu0
    %v2092 = vadd.f32 %v2079, %v2091
    %v2093 = vpop.f32.mrf.mxu0
    %2094 = vdwg.mxu0
    %2095 = vmatpush.bf16.msra.mxu0 %v1987
    %2096 = vmatpush.bf16.msra.mxu0 %v1985
    %2097 = vmatpush.bf16.msra.mxu0 %v1983
    %2098 = vmatpush.bf16.msra.mxu0 %v1981
    %2099 = vmatpush.bf16.msra.mxu0 %v1979
    %2100 = vmatpush.bf16.msra.mxu0 %v1977
    %2101 = vmatpush.bf16.msra.mxu0 %v1975
    %2102 = vmatpush.bf16.msra.mxu0 %v1973
    %2103 = vmatmul.bf16.gmra.mxu0 %v1677
    %v2104 = vpop.f32.mrf.mxu0
    %v2105 = vadd.f32 %v2092, %v2104
    %v2106 = vpop.f32.mrf.mxu0
    %2107 = vdwg.mxu0
    %2108 = vmatpush.bf16.msra.mxu0 %v2003
    %2109 = vmatpush.bf16.msra.mxu0 %v2001
    %2110 = vmatpush.bf16.msra.mxu0 %v1999
    %2111 = vmatpush.bf16.msra.mxu0 %v1997
    %2112 = vmatpush.bf16.msra.mxu0 %v1995
    %2113 = vmatpush.bf16.msra.mxu0 %v1993
    %2114 = vmatpush.bf16.msra.mxu0 %v1991
    %2115 = vmatpush.bf16.msra.mxu0 %v1989
    %2116 = vmatmul.bf16.gmra.mxu0 %v1678
    %v2117 = vpop.f32.mrf.mxu0
    %v2118 = vadd.f32 %v2105, %v2117
    %v2119 = vpop.f32.mrf.mxu0
    %2120 = vdwg.mxu0
    %2121 = vmatpush.bf16.msra.mxu0 %v1956
    %2122 = vmatpush.bf16.msra.mxu0 %v1954
    %2123 = vmatpush.bf16.msra.mxu0 %v1952
    %2124 = vmatpush.bf16.msra.mxu0 %v1950
    %2125 = vmatpush.bf16.msra.mxu0 %v1948
    %2126 = vmatpush.bf16.msra.mxu0 %v1946
    %2127 = vmatpush.bf16.msra.mxu0 %v1944
    %2128 = vmatpush.bf16.msra.mxu0 %v1942
    %2129 = vmatmul.bf16.gmra.mxu0 %v1675
    %v2130 = vpop.f32.mrf.mxu0
    %v2131 = vadd.f32 %v1746, %v2130
    %v2132 = vpop.f32.mrf.mxu0
    %2133 = vdwg.mxu0
    %2134 = vmatpush.bf16.msra.mxu0 %v1972
    %2135 = vmatpush.bf16.msra.mxu0 %v1970
    %2136 = vmatpush.bf16.msra.mxu0 %v1968
    %2137 = vmatpush.bf16.msra.mxu0 %v1966
    %2138 = vmatpush.bf16.msra.mxu0 %v1964
    %2139 = vmatpush.bf16.msra.mxu0 %v1962
    %2140 = vmatpush.bf16.msra.mxu0 %v1960
    %2141 = vmatpush.bf16.msra.mxu0 %v1958
    %2142 = vmatmul.bf16.gmra.mxu0 %v1676
    %v2143 = vpop.f32.mrf.mxu0
    %v2144 = vadd.f32 %v2131, %v2143
    %v2145 = vpop.f32.mrf.mxu0
    %2146 = vdwg.mxu0
    %2147 = vmatpush.bf16.msra.mxu0 %v1988
    %2148 = vmatpush.bf16.msra.mxu0 %v1986
    %2149 = vmatpush.bf16.msra.mxu0 %v1984
    %2150 = vmatpush.bf16.msra.mxu0 %v1982
    %2151 = vmatpush.bf16.msra.mxu0 %v1980
    %2152 = vmatpush.bf16.msra.mxu0 %v1978
    %2153 = vmatpush.bf16.msra.mxu0 %v1976
    %2154 = vmatpush.bf16.msra.mxu0 %v1974
    %2155 = vmatmul.bf16.gmra.mxu0 %v1677
    %v2156 = vpop.f32.mrf.mxu0
    %v2157 = vadd.f32 %v2144, %v2156
    %v2158 = vpop.f32.mrf.mxu0
    %2159 = vdwg.mxu0
    %2160 = vmatpush.bf16.msra.mxu0 %v2004
    %2161 = vmatpush.bf16.msra.mxu0 %v2002
    %2162 = vmatpush.bf16.msra.mxu0 %v2000
    %2163 = vmatpush.bf16.msra.mxu0 %v1998
    %2164 = vmatpush.bf16.msra.mxu0 %v1996
    %2165 = vmatpush.bf16.msra.mxu0 %v1994
    %2166 = vmatpush.bf16.msra.mxu0 %v1992
    %2167 = vmatpush.bf16.msra.mxu0 %v1990
    %2168 = vmatmul.bf16.gmra.mxu0 %v1678
    %v2169 = vpop.f32.mrf.mxu0
    %v2170 = vadd.f32 %v2157, %v2169
    %v2171 = vpop.f32.mrf.mxu0
    %2172 = vdwg.mxu0
    %v2173 = vmul.f32 %v2118, 0.2
    %v2174 = vmul.f32 %v2170, 0.2
    %v2175 = vmax.f32 %v2118, %v2173
    %v2176 = vmax.f32 %v2170, %v2174
    %v2177 = vld [vmem:[%s5] sm:$0x3]
    %v2179 = vperm.slane %v2177, 0
    %v2180 = vperm.slane %v2177, 1
    %v2183 = vmul.f32 %v2175, %v2179
    %v2184 = vmul.f32 %v2176, %v2180
    %v2185 = vadd.f32 %v2183, %v2184
    %2186 = vadd.xlane.f32.xlu0 %v2185
    %v2187 = vpop.xlane.xlu0 %2186
    %v2188 = vld [vmem:[#allocation2] sm:$0x1]
    %v2190 = vperm.slane %v2188, 0
    %v2192 = vadd.f32 %v2187, %v2190
    %v2193 = vand.u32 2147483647, %v2192
    %v2194 = vsub.f32 0.0, %v2193
    %v2195 = vmul.f32 %v2194, 1.442695
    %v2196 = vpow.pop %v2195
    %v2197 = vadd.f32 %v2196, 1.0
    %v2198 = vrcp.pop %v2197
    %v2199 = vmul.f32 %v2197, %v2198
    %v2200 = vsub.f32 1.0, %v2199
    %v2201 = vmul.f32 %v2198, %v2200
    %v2202 = vadd.f32 %v2198, %v2201
    %vm2203 = vweird.f32 %v2197
    %vm2204 = vweird.f32 %v2198
    %vm2205 = vmor %vm2203, %vm2204
    %v2206 = vsel %vm2205, %v2198, %v2202
    %v2207 = vand.u32 2147483647, %v2197
    %vm2208 = vcmp.eq.f32.partialorder %v2207, 8.507059e+37
    %v2209 = vand.u32 %v2197, 2147483648
    %v2210 = vor.u32 1.1754944e-38, %v2209
    %v2211 = vsel %vm2208, %v2210, %v2206
    %vm2212 = vcmp.ge.f32.partialorder %v2192, 0.0
    %v2213 = vmul.f32 %v2196, %v2211
    %v2214 = vsel %vm2212, %v2211, %v2213
    %vm2215 = vcmask 7168
    %2216 = vst.msk [vmem:[#allocation7] sm:$0xff] %vm2215, %v2214
    // Predicated region
    $region38: #{discriminator_forward.1} parent=1 // pred_check
      _
    $region39: #{discriminator_forward.1} parent=1 // pred_check_branch
      %2218 = sbr.rel (0) target = $region41
    $region40: #{discriminator_forward.1} parent=1 // pred_region
      // Predicated region
      $region42: #{discriminator_forward.1} parent=40 // pred_check
        _
      $region43: #{discriminator_forward.1} parent=40 // pred_check_branch
        %2220 = sbr.rel (0) target = $region45
      $region44: #{discriminator_forward.1} parent=40 // pred_region
        // Predicated region
        $region46: #{discriminator_forward.1} parent=44 // pred_check
          _
        $region47: #{discriminator_forward.1} parent=44 // pred_check_branch
          %2222 = sbr.rel target = $region49
        $region48: #{discriminator_forward.1} parent=44 // pred_region
          // Predicated region
          $region61: #{discriminator_forward.1} parent=48 // pred_check
            _
          $region62: #{discriminator_forward.1} parent=48 // pred_check_branch
            %2238 = sbr.rel (0) target = $region64
          $region63: #{discriminator_forward.1} parent=48 // pred_region
            %s2240 = ssub.s32 4, 1
            loop: start=0, step=1, limit=1
            $region65: #{discriminator_forward.1} parent=63 // loop_pre_header
              _
            $region66: #{discriminator_forward.1} parent=63 // loop_header
              %s2242 = sphi 0, %s2246
              %p2243 = scmp.ge.s32.totalorder %s2242, 1
              %s2247 = sphi [#allocation7], [#allocation7]
              %s2248 = sphi %s7, %s7
            $region67: #{discriminator_forward.1} parent=63 // loop_header_branch
              %2245 = sbr.rel (%p2243) target = $region71
            $region68: #{discriminator_forward.1} parent=63 // loop_body
              %v2249 = vld [vmem:[%s2247] sm:%s2240]
              %2250 = vst [vmem:[%s2248] sm:%s2240] %v2249
            $region69: #{discriminator_forward.1} parent=63 // loop_footer
              %s2246 = sadd.s32 1, %s2242
            $region70: #{discriminator_forward.1} parent=63 // loop_footer_branch
              %2241 = sbr.rel target = $region66
            $region71: #{discriminator_forward.1} parent=63 // loop_exit
              _
          $region64: #{discriminator_forward.1} parent=48 // pred_fallthru
            _
        $region49: #{discriminator_forward.1} parent=44 // pred_fallthru
          _
        // Predicated region
        $region50: #{discriminator_forward.1} parent=44 // pred_check
          _
        $region51: #{discriminator_forward.1} parent=44 // pred_check_branch
          %2224 = sbr.rel (0) target = $region53
        $region52: #{discriminator_forward.1} parent=44 // pred_region
          %s2226 = ssub.s32 4, 1
          loop: start=0, step=1, limit=1
          $region54: #{discriminator_forward.1} parent=52 // loop_pre_header
            _
          $region55: #{discriminator_forward.1} parent=52 // loop_header
            %s2228 = sphi 0, %s2232
            %p2229 = scmp.ge.s32.totalorder %s2228, 1
            %s2233 = sphi [#allocation7], [#allocation7]
            %s2234 = sphi %s7, %s7
          $region56: #{discriminator_forward.1} parent=52 // loop_header_branch
            %2231 = sbr.rel (%p2229) target = $region60
          $region57: #{discriminator_forward.1} parent=52 // loop_body
            %v2235 = vld [vmem:[%s2233] sm:%s2226]
            %2236 = vst [vmem:[%s2234] sm:%s2226] %v2235
          $region58: #{discriminator_forward.1} parent=52 // loop_footer
            %s2232 = sadd.s32 1, %s2228
          $region59: #{discriminator_forward.1} parent=52 // loop_footer_branch
            %2227 = sbr.rel target = $region55
          $region60: #{discriminator_forward.1} parent=52 // loop_exit
            _
        $region53: #{discriminator_forward.1} parent=44 // pred_fallthru
          _
      $region45: #{discriminator_forward.1} parent=40 // pred_fallthru
        _
      %2251 = vnop
    $region41: #{discriminator_forward.1} parent=1 // pred_fallthru
      _
    // Predicated region
    $region72: #{discriminator_forward.1} parent=1 // pred_check
      _
    $region73: #{discriminator_forward.1} parent=1 // pred_check_branch
      %2253 = sbr.rel (0) target = $region75
    $region74: #{discriminator_forward.1} parent=1 // pred_region
      _
    $region75: #{discriminator_forward.1} parent=1 // pred_fallthru
      _
    %2254 = vsyncpa [#allocation4], 1
    %2255 = vsyncpa [#allocation6], 1

</llo_original>
